<compile_context>
chip_gen: v5e
topology: v5e:2x2
jax: 0.10.0
libtpu: 0.0.40
codegen_flags: <defaults>
</compile_context>

<pallas_src>
import math

import jax
import jax.numpy as jnp
from jax.experimental import pallas as pl
from jax.experimental.pallas import tpu as pltpu

D_IN = 326
D_HID = 300
D_OUT = 1
NEG_SLOPE = 0.01  # torch.nn.LeakyReLU default

# Lane-aligned (multiple-of-128) padded dims.
D_IN_PAD = 384
D_HID_PAD = 384
D_OUT_PAD = 128

WEIGHT_DTYPE = jnp.bfloat16


def _round_up(n, m):
    return ((n + m - 1) // m) * m


def _leaky_relu(v):
    # For slope < 1:  max(v, slope*v) == LeakyReLU(v).  Single VALU op.
    return jnp.maximum(v, NEG_SLOPE * v)


def mlp_kernel(x_ref, *refs):
    """refs = (w1, b1, ..., w6, b6, o_ref). All tiles already resident in VMEM."""
    o_ref = refs[-1]
    wb = refs[:-1]
    n_layers = len(wb) // 2

    h = x_ref[...]  # (TILE_B, D_IN_PAD) bf16
    for i in range(n_layers):
        w_ref = wb[2 * i]
        b_ref = wb[2 * i + 1]
        # bf16 MXU matmul with f32 accumulation; bias add + activation in f32.
        y = jnp.dot(h.astype(w_ref.dtype), w_ref[...],
                    preferred_element_type=jnp.float32) + b_ref[...]
        h = y if i == n_layers - 1 else _leaky_relu(y)
    o_ref[...] = h.astype(o_ref.dtype)


def init_params(key):
    """torch.nn.Linear-style init: U(-1/sqrt(fan_in), +1/sqrt(fan_in)), f32, unpadded."""
    dims = [(D_IN, D_HID)] + [(D_HID, D_HID)] * 4 + [(D_HID, D_OUT)]
    params = []
    for fan_in, fan_out in dims:
        key, kw, kb = jax.random.split(key, 3)
        bound = 1.0 / math.sqrt(fan_in)
        # stored already transposed: (in, out)
        w = jax.random.uniform(kw, (fan_in, fan_out), jnp.float32, -bound, bound)
        b = jax.random.uniform(kb, (fan_out,), jnp.float32, -bound, bound)
        params.append((w, b))
    return params


def pack_params(params, weight_dtype=WEIGHT_DTYPE):
    """Zero-pad to lane-aligned shapes; weights cast to bf16, biases stay f32 (1, out_pad)."""
    in_pads = [D_IN_PAD] + [D_HID_PAD] * 5
    out_pads = [D_HID_PAD] * 5 + [D_OUT_PAD]
    packed = []
    for (w, b), ip, op in zip(params, in_pads, out_pads):
        wp = jnp.zeros((ip, op), jnp.float32).at[:w.shape[0], :w.shape[1]].set(w)
        bp = jnp.zeros((1, op), jnp.float32).at[0, :b.shape[0]].set(b)
        packed.append((wp.astype(weight_dtype), bp))
    return packed


def airfoil_predictor(x, packed_params, *, tile_b=512):
    """x: (B, 326) f32. Returns (B, 1) f32."""
    B = x.shape[0]
    # Batch tile: <= tile_b, multiple of 8 (sublane), sized for v7x's smaller VMEM.
    tile_b = max(8, min(tile_b, _round_up(B, 8)))
    b_pad = _round_up(B, tile_b)

    # Pre-cast to bf16 (same numerics as in-kernel cast before the first matmul,
    # but halves the input DMA traffic).
    x_pad = (jnp.zeros((b_pad, D_IN_PAD), jnp.float32)
             .at[:B, :D_IN].set(x)
             .astype(WEIGHT_DTYPE))

    flat = []
    param_specs = []
    for w, b in packed_params:
        flat.extend([w, b])
        # Constant block index -> DMA'd once, resident in VMEM for all grid steps.
        param_specs.append(pl.BlockSpec(w.shape, lambda i: (0, 0)))
        param_specs.append(pl.BlockSpec(b.shape, lambda i: (0, 0)))

    grid = (b_pad // tile_b,)

    flops = 2 * b_pad * (D_IN_PAD * D_HID_PAD
                         + 4 * D_HID_PAD * D_HID_PAD
                         + D_HID_PAD * D_OUT_PAD)
    bytes_accessed = (sum(int(v.size) * v.dtype.itemsize for v in flat)
                      + int(x_pad.size) * x_pad.dtype.itemsize
                      + b_pad * D_OUT_PAD * 4)

    out = pl.pallas_call(
        mlp_kernel,
        out_shape=jax.ShapeDtypeStruct((b_pad, D_OUT_PAD), jnp.float32),
        grid=grid,
        in_specs=[pl.BlockSpec((tile_b, D_IN_PAD), lambda i: (i, 0))] + param_specs,
        out_specs=pl.BlockSpec((tile_b, D_OUT_PAD), lambda i: (i, 0)),
        compiler_params=pltpu.CompilerParams(
            dimension_semantics=("parallel",),      # shards batch axis across v7x's 2 TCs
            vmem_limit_bytes=32 * 1024 * 1024,      # lift v5e's 16 MiB scoped default
        ),
        cost_estimate=pl.CostEstimate(
            flops=flops, transcendentals=0, bytes_accessed=bytes_accessed),
    )(x_pad, *flat)

    # Strip batch padding and the lane padding of the final layer.
    return out[:B, :D_OUT]


# ----------------------------- references ---------------------------------

def airfoil_ref_f32(x, params):
    """Pure f32 reference == original torch forward semantics."""
    h = x
    for i, (w, b) in enumerate(params):
        h = h @ w + b
        if i < len(params) - 1:
            h = jnp.where(h >= 0, h, NEG_SLOPE * h)
    return h


def airfoil_ref_matched(x, params, weight_dtype=WEIGHT_DTYPE):
    """Reference with the same bf16-weight / f32-accumulate math as the kernel."""
    h = x
    for i, (w, b) in enumerate(params):
        h = jnp.dot(h.astype(weight_dtype), w.astype(weight_dtype),
                    preferred_element_type=jnp.float32) + b
        if i < len(params) - 1:
            h = jnp.where(h >= 0, h, NEG_SLOPE * h)
    return h


if __name__ == "__main__":
    key = jax.random.PRNGKey(0)
    kp, kx = jax.random.split(key)

    params = init_params(kp)          # unpadded f32 (torch-equivalent) params
    packed = pack_params(params)      # padded bf16 weights / f32 biases for the kernel

    B = 8
    x = jax.random.normal(kx, (B, D_IN), jnp.float32)

    out = jax.block_until_ready(airfoil_predictor(x, packed))
    assert out.shape == (B, D_OUT)

    # Same-precision reference (bf16 weights, f32 accumulation): should match tightly.
    ref_m = airfoil_ref_matched(x, params)
    assert jnp.allclose(out, ref_m, atol=1e-3, rtol=1e-3), "mismatch vs matched-precision reference"

    # Full-f32 reference (original torch semantics): loose tolerance for bf16 weight storage.
    ref_f = airfoil_ref_f32(x, params)
    assert jnp.allclose(out, ref_f, atol=2e-2, rtol=2e-2), "mismatch vs f32 reference"

    print("KERNEL_OK")
</pallas_src>

<mosaic_0001>
module attributes {stable_mosaic.version = 11 : i64} {
  func.func @mlp_kernel(%arg0: i32, %arg1: memref<8x384xbf16, #tpu.memory_space<vmem>>, %arg2: memref<384x384xbf16, #tpu.memory_space<vmem>>, %arg3: memref<1x384xf32, #tpu.memory_space<vmem>>, %arg4: memref<384x384xbf16, #tpu.memory_space<vmem>>, %arg5: memref<1x384xf32, #tpu.memory_space<vmem>>, %arg6: memref<384x384xbf16, #tpu.memory_space<vmem>>, %arg7: memref<1x384xf32, #tpu.memory_space<vmem>>, %arg8: memref<384x384xbf16, #tpu.memory_space<vmem>>, %arg9: memref<1x384xf32, #tpu.memory_space<vmem>>, %arg10: memref<384x384xbf16, #tpu.memory_space<vmem>>, %arg11: memref<1x384xf32, #tpu.memory_space<vmem>>, %arg12: memref<384x128xbf16, #tpu.memory_space<vmem>>, %arg13: memref<1x128xf32, #tpu.memory_space<vmem>>, %arg14: memref<8x128xf32, #tpu.memory_space<vmem>>) attributes {dimension_semantics = [#tpu.dimension_semantics<parallel>], iteration_bounds = array<i64: 1>, scalar_prefetch = 0 : i64, scratch_operands = 0 : i64, tpu.core_type = #tpu.core_type<tc>, window_params = [{transform_indices = @transform_0, window_bounds = array<i64: 8, 384>}, {pipeline_mode = #tpu.pipeline_mode<synchronous>, transform_indices = @transform_1, window_bounds = array<i64: 384, 384>}, {pipeline_mode = #tpu.pipeline_mode<synchronous>, transform_indices = @transform_2, window_bounds = array<i64: 1, 384>}, {pipeline_mode = #tpu.pipeline_mode<synchronous>, transform_indices = @transform_3, window_bounds = array<i64: 384, 384>}, {pipeline_mode = #tpu.pipeline_mode<synchronous>, transform_indices = @transform_4, window_bounds = array<i64: 1, 384>}, {pipeline_mode = #tpu.pipeline_mode<synchronous>, transform_indices = @transform_5, window_bounds = array<i64: 384, 384>}, {pipeline_mode = #tpu.pipeline_mode<synchronous>, transform_indices = @transform_6, window_bounds = array<i64: 1, 384>}, {pipeline_mode = #tpu.pipeline_mode<synchronous>, transform_indices = @transform_7, window_bounds = array<i64: 384, 384>}, {pipeline_mode = #tpu.pipeline_mode<synchronous>, transform_indices = @transform_8, window_bounds = array<i64: 1, 384>}, {pipeline_mode = #tpu.pipeline_mode<synchronous>, transform_indices = @transform_9, window_bounds = array<i64: 384, 384>}, {pipeline_mode = #tpu.pipeline_mode<synchronous>, transform_indices = @transform_10, window_bounds = array<i64: 1, 384>}, {pipeline_mode = #tpu.pipeline_mode<synchronous>, transform_indices = @transform_11, window_bounds = array<i64: 384, 128>}, {pipeline_mode = #tpu.pipeline_mode<synchronous>, transform_indices = @transform_12, window_bounds = array<i64: 1, 128>}, {transform_indices = @transform_13, window_bounds = array<i64: 8, 128>}]} {
    %c0 = arith.constant 0 : index
    %c0_0 = arith.constant 0 : index
    %0 = vector.load %arg1[%c0, %c0_0] : memref<8x384xbf16, #tpu.memory_space<vmem>>, vector<8x384xbf16>
    %c0_1 = arith.constant 0 : index
    %c0_2 = arith.constant 0 : index
    %1 = vector.load %arg2[%c0_1, %c0_2] : memref<384x384xbf16, #tpu.memory_space<vmem>>, vector<384x384xbf16>
    %cst = arith.constant dense<0.000000e+00> : vector<8x384xf32>
    %2 = tpu.matmul %0, %1, %cst {dimension_numbers = #tpu.dot_dimension_numbers<[1], [0], [0], [1], [0, 0, 1, 1], [], []>} : vector<8x384xbf16>, vector<384x384xbf16>, vector<8x384xf32> -> vector<8x384xf32>
    %c0_3 = arith.constant 0 : index
    %c0_4 = arith.constant 0 : index
    %3 = vector.load %arg3[%c0_3, %c0_4] : memref<1x384xf32, #tpu.memory_space<vmem>>, vector<1x384xf32>
    %4 = vector.broadcast %3 : vector<1x384xf32> to vector<8x384xf32>
    %5 = arith.addf %2, %4 : vector<8x384xf32>
    %cst_5 = arith.constant 0.00999999977 : f32
    %6 = vector.broadcast %cst_5 : f32 to vector<8x384xf32>
    %7 = arith.mulf %6, %5 : vector<8x384xf32>
    %8 = arith.maximumf %5, %7 : vector<8x384xf32>
    %9 = arith.truncf %8 : vector<8x384xf32> to vector<8x384xbf16>
    %c0_6 = arith.constant 0 : index
    %c0_7 = arith.constant 0 : index
    %10 = vector.load %arg4[%c0_6, %c0_7] : memref<384x384xbf16, #tpu.memory_space<vmem>>, vector<384x384xbf16>
    %cst_8 = arith.constant dense<0.000000e+00> : vector<8x384xf32>
    %11 = tpu.matmul %9, %10, %cst_8 {dimension_numbers = #tpu.dot_dimension_numbers<[1], [0], [0], [1], [0, 0, 1, 1], [], []>} : vector<8x384xbf16>, vector<384x384xbf16>, vector<8x384xf32> -> vector<8x384xf32>
    %c0_9 = arith.constant 0 : index
    %c0_10 = arith.constant 0 : index
    %12 = vector.load %arg5[%c0_9, %c0_10] : memref<1x384xf32, #tpu.memory_space<vmem>>, vector<1x384xf32>
    %13 = vector.broadcast %12 : vector<1x384xf32> to vector<8x384xf32>
    %14 = arith.addf %11, %13 : vector<8x384xf32>
    %cst_11 = arith.constant 0.00999999977 : f32
    %15 = vector.broadcast %cst_11 : f32 to vector<8x384xf32>
    %16 = arith.mulf %15, %14 : vector<8x384xf32>
    %17 = arith.maximumf %14, %16 : vector<8x384xf32>
    %18 = arith.truncf %17 : vector<8x384xf32> to vector<8x384xbf16>
    %c0_12 = arith.constant 0 : index
    %c0_13 = arith.constant 0 : index
    %19 = vector.load %arg6[%c0_12, %c0_13] : memref<384x384xbf16, #tpu.memory_space<vmem>>, vector<384x384xbf16>
    %cst_14 = arith.constant dense<0.000000e+00> : vector<8x384xf32>
    %20 = tpu.matmul %18, %19, %cst_14 {dimension_numbers = #tpu.dot_dimension_numbers<[1], [0], [0], [1], [0, 0, 1, 1], [], []>} : vector<8x384xbf16>, vector<384x384xbf16>, vector<8x384xf32> -> vector<8x384xf32>
    %c0_15 = arith.constant 0 : index
    %c0_16 = arith.constant 0 : index
    %21 = vector.load %arg7[%c0_15, %c0_16] : memref<1x384xf32, #tpu.memory_space<vmem>>, vector<1x384xf32>
    %22 = vector.broadcast %21 : vector<1x384xf32> to vector<8x384xf32>
    %23 = arith.addf %20, %22 : vector<8x384xf32>
    %cst_17 = arith.constant 0.00999999977 : f32
    %24 = vector.broadcast %cst_17 : f32 to vector<8x384xf32>
    %25 = arith.mulf %24, %23 : vector<8x384xf32>
    %26 = arith.maximumf %23, %25 : vector<8x384xf32>
    %27 = arith.truncf %26 : vector<8x384xf32> to vector<8x384xbf16>
    %c0_18 = arith.constant 0 : index
    %c0_19 = arith.constant 0 : index
    %28 = vector.load %arg8[%c0_18, %c0_19] : memref<384x384xbf16, #tpu.memory_space<vmem>>, vector<384x384xbf16>
    %cst_20 = arith.constant dense<0.000000e+00> : vector<8x384xf32>
    %29 = tpu.matmul %27, %28, %cst_20 {dimension_numbers = #tpu.dot_dimension_numbers<[1], [0], [0], [1], [0, 0, 1, 1], [], []>} : vector<8x384xbf16>, vector<384x384xbf16>, vector<8x384xf32> -> vector<8x384xf32>
    %c0_21 = arith.constant 0 : index
    %c0_22 = arith.constant 0 : index
    %30 = vector.load %arg9[%c0_21, %c0_22] : memref<1x384xf32, #tpu.memory_space<vmem>>, vector<1x384xf32>
    %31 = vector.broadcast %30 : vector<1x384xf32> to vector<8x384xf32>
    %32 = arith.addf %29, %31 : vector<8x384xf32>
    %cst_23 = arith.constant 0.00999999977 : f32
    %33 = vector.broadcast %cst_23 : f32 to vector<8x384xf32>
    %34 = arith.mulf %33, %32 : vector<8x384xf32>
    %35 = arith.maximumf %32, %34 : vector<8x384xf32>
    %36 = arith.truncf %35 : vector<8x384xf32> to vector<8x384xbf16>
    %c0_24 = arith.constant 0 : index
    %c0_25 = arith.constant 0 : index
    %37 = vector.load %arg10[%c0_24, %c0_25] : memref<384x384xbf16, #tpu.memory_space<vmem>>, vector<384x384xbf16>
    %cst_26 = arith.constant dense<0.000000e+00> : vector<8x384xf32>
    %38 = tpu.matmul %36, %37, %cst_26 {dimension_numbers = #tpu.dot_dimension_numbers<[1], [0], [0], [1], [0, 0, 1, 1], [], []>} : vector<8x384xbf16>, vector<384x384xbf16>, vector<8x384xf32> -> vector<8x384xf32>
    %c0_27 = arith.constant 0 : index
    %c0_28 = arith.constant 0 : index
    %39 = vector.load %arg11[%c0_27, %c0_28] : memref<1x384xf32, #tpu.memory_space<vmem>>, vector<1x384xf32>
    %40 = vector.broadcast %39 : vector<1x384xf32> to vector<8x384xf32>
    %41 = arith.addf %38, %40 : vector<8x384xf32>
    %cst_29 = arith.constant 0.00999999977 : f32
    %42 = vector.broadcast %cst_29 : f32 to vector<8x384xf32>
    %43 = arith.mulf %42, %41 : vector<8x384xf32>
    %44 = arith.maximumf %41, %43 : vector<8x384xf32>
    %45 = arith.truncf %44 : vector<8x384xf32> to vector<8x384xbf16>
    %c0_30 = arith.constant 0 : index
    %c0_31 = arith.constant 0 : index
    %46 = vector.load %arg12[%c0_30, %c0_31] : memref<384x128xbf16, #tpu.memory_space<vmem>>, vector<384x128xbf16>
    %cst_32 = arith.constant dense<0.000000e+00> : vector<8x128xf32>
    %47 = tpu.matmul %45, %46, %cst_32 {dimension_numbers = #tpu.dot_dimension_numbers<[1], [0], [0], [1], [0, 0, 1, 1], [], []>} : vector<8x384xbf16>, vector<384x128xbf16>, vector<8x128xf32> -> vector<8x128xf32>
    %c0_33 = arith.constant 0 : index
    %c0_34 = arith.constant 0 : index
    %48 = vector.load %arg13[%c0_33, %c0_34] : memref<1x128xf32, #tpu.memory_space<vmem>>, vector<1x128xf32>
    %49 = vector.broadcast %48 : vector<1x128xf32> to vector<8x128xf32>
    %50 = arith.addf %47, %49 : vector<8x128xf32>
    %c0_35 = arith.constant 0 : index
    %c0_36 = arith.constant 0 : index
    %51 = vector.load %arg14[%c0_35, %c0_36] : memref<8x128xf32, #tpu.memory_space<vmem>>, vector<8x128xf32>
    tpu.vector_store %arg14[%c0_35, %c0_36], %50 {strides = array<i32>} : memref<8x128xf32, #tpu.memory_space<vmem>>, vector<8x128xf32>,
    return
  }
  func.func @transform_0(%arg0: i32) -> (i32, i32) {
    %c0_i32 = arith.constant 0 : i32
    %c0_i32_0 = arith.constant 0 : i32
    return %arg0, %c0_i32 : i32, i32
  }
  func.func @transform_1(%arg0: i32) -> (i32, i32) {
    %c0_i32 = arith.constant 0 : i32
    %c0_i32_0 = arith.constant 0 : i32
    %c0_i32_1 = arith.constant 0 : i32
    return %c0_i32, %c0_i32_0 : i32, i32
  }
  func.func @transform_2(%arg0: i32) -> (i32, i32) {
    %c0_i32 = arith.constant 0 : i32
    %c0_i32_0 = arith.constant 0 : i32
    %c0_i32_1 = arith.constant 0 : i32
    return %c0_i32, %c0_i32_0 : i32, i32
  }
  func.func @transform_3(%arg0: i32) -> (i32, i32) {
    %c0_i32 = arith.constant 0 : i32
    %c0_i32_0 = arith.constant 0 : i32
    %c0_i32_1 = arith.constant 0 : i32
    return %c0_i32, %c0_i32_0 : i32, i32
  }
  func.func @transform_4(%arg0: i32) -> (i32, i32) {
    %c0_i32 = arith.constant 0 : i32
    %c0_i32_0 = arith.constant 0 : i32
    %c0_i32_1 = arith.constant 0 : i32
    return %c0_i32, %c0_i32_0 : i32, i32
  }
  func.func @transform_5(%arg0: i32) -> (i32, i32) {
    %c0_i32 = arith.constant 0 : i32
    %c0_i32_0 = arith.constant 0 : i32
    %c0_i32_1 = arith.constant 0 : i32
    return %c0_i32, %c0_i32_0 : i32, i32
  }
  func.func @transform_6(%arg0: i32) -> (i32, i32) {
    %c0_i32 = arith.constant 0 : i32
    %c0_i32_0 = arith.constant 0 : i32
    %c0_i32_1 = arith.constant 0 : i32
    return %c0_i32, %c0_i32_0 : i32, i32
  }
  func.func @transform_7(%arg0: i32) -> (i32, i32) {
    %c0_i32 = arith.constant 0 : i32
    %c0_i32_0 = arith.constant 0 : i32
    %c0_i32_1 = arith.constant 0 : i32
    return %c0_i32, %c0_i32_0 : i32, i32
  }
  func.func @transform_8(%arg0: i32) -> (i32, i32) {
    %c0_i32 = arith.constant 0 : i32
    %c0_i32_0 = arith.constant 0 : i32
    %c0_i32_1 = arith.constant 0 : i32
    return %c0_i32, %c0_i32_0 : i32, i32
  }
  func.func @transform_9(%arg0: i32) -> (i32, i32) {
    %c0_i32 = arith.constant 0 : i32
    %c0_i32_0 = arith.constant 0 : i32
    %c0_i32_1 = arith.constant 0 : i32
    return %c0_i32, %c0_i32_0 : i32, i32
  }
  func.func @transform_10(%arg0: i32) -> (i32, i32) {
    %c0_i32 = arith.constant 0 : i32
    %c0_i32_0 = arith.constant 0 : i32
    %c0_i32_1 = arith.constant 0 : i32
    return %c0_i32, %c0_i32_0 : i32, i32
  }
  func.func @transform_11(%arg0: i32) -> (i32, i32) {
    %c0_i32 = arith.constant 0 : i32
    %c0_i32_0 = arith.constant 0 : i32
    %c0_i32_1 = arith.constant 0 : i32
    return %c0_i32, %c0_i32_0 : i32, i32
  }
  func.func @transform_12(%arg0: i32) -> (i32, i32) {
    %c0_i32 = arith.constant 0 : i32
    %c0_i32_0 = arith.constant 0 : i32
    %c0_i32_1 = arith.constant 0 : i32
    return %c0_i32, %c0_i32_0 : i32, i32
  }
  func.func @transform_13(%arg0: i32) -> (i32, i32) {
    %c0_i32 = arith.constant 0 : i32
    %c0_i32_0 = arith.constant 0 : i32
    return %arg0, %c0_i32 : i32, i32
  }
}

</mosaic_0001>

<llo_original>
// kernel: tpu_custom_call.1
$region0: #{tpu_custom_call.1}
  #allocation0 [shape = 'u32[]', space=smem, size = 0x4, offset = 0x4, fixed_abs, tag = 'smem constant byte address 0x4 - core index']
  #allocation1 [shape = 'u32[72,128]{1,0:T(1,128)}', space=vmem, size = 0x9000, scoped, tag = 'internal scratch']
  %s0 = inlined_call_operand.hbm [shape: bf16[8,384], index: 0, kind: input, shape index: {}]
  %s1 = inlined_call_operand.hbm [shape: bf16[384,384], index: 1, kind: input, shape index: {}]
  %s2 = inlined_call_operand.hbm [shape: f32[1,384], index: 2, kind: input, shape index: {}]
  %s3 = inlined_call_operand.hbm [shape: bf16[384,384], index: 3, kind: input, shape index: {}]
  %s4 = inlined_call_operand.vmem [shape: f32[1,384], index: 4, kind: input, shape index: {}]
  %s5 = inlined_call_operand.hbm [shape: bf16[384,384], index: 5, kind: input, shape index: {}]
  %s6 = inlined_call_operand.hbm [shape: f32[1,384], index: 6, kind: input, shape index: {}]
  %s7 = inlined_call_operand.hbm [shape: bf16[384,384], index: 7, kind: input, shape index: {}]
  %s8 = inlined_call_operand.vmem [shape: f32[1,384], index: 8, kind: input, shape index: {}]
  %s9 = inlined_call_operand.hbm [shape: bf16[384,384], index: 9, kind: input, shape index: {}]
  %s10 = inlined_call_operand.vmem [shape: f32[1,384], index: 10, kind: input, shape index: {}]
  %s11 = inlined_call_operand.hbm [shape: bf16[384,128], index: 11, kind: input, shape index: {}]
  %s12 = inlined_call_operand.vmem [shape: f32[1,128], index: 12, kind: input, shape index: {}]
  %s13 = inlined_call_operand.hbm [shape: f32[8,128], index: 13, kind: output, shape index: {}]
  %s14 = sld [smem:[#allocation0]]
  $region98: #{tpu_custom_call.1} parent=0
    _
  %s16 = ssub.s32 1, %s14
  %s17 = scalar_select 0, %s16, %s14
  $region1: #{tpu_custom_call.1} parent=0
    #allocation2 [shape = 'u8[6144]{0}', space=vmem, size = 0x1800, scoped, tag = 'input window, operand 0, single buffered']
    #allocation3 [shape = 's32[1]{0}', space=sflag, size = 0x4, scoped, tag = 'scoped memory for tpu_custom_call.1']
    #allocation4 [shape = 's32[1]{0}', space=sflag, size = 0x4, scoped, tag = 'scoped memory for tpu_custom_call.1']
    #allocation5 [shape = 'u8[294912]{0}', space=vmem, size = 0x48000, scoped, tag = 'input window, operand 1, single buffered']
    #allocation6 [shape = 's32[1]{0}', space=sflag, size = 0x4, scoped, tag = 'scoped memory for tpu_custom_call.1']
    #allocation7 [shape = 'u8[1536]{0}', space=vmem, size = 0x800, scoped, tag = 'input window, operand 2, single buffered']
    #allocation8 [shape = 'u8[294912]{0}', space=vmem, size = 0x48000, scoped, tag = 'input window, operand 3, single buffered']
    #allocation9 [shape = 's32[1]{0}', space=sflag, size = 0x4, scoped, tag = 'scoped memory for tpu_custom_call.1']
    #allocation10 [shape = 'u8[294912]{0}', space=vmem, size = 0x48000, scoped, tag = 'input window, operand 5, single buffered']
    #allocation11 [shape = 'u8[1536]{0}', space=vmem, size = 0x800, scoped, tag = 'input window, operand 6, single buffered']
    #allocation12 [shape = 's32[1]{0}', space=sflag, size = 0x4, scoped, tag = 'scoped memory for tpu_custom_call.1']
    #allocation13 [shape = 'u8[294912]{0}', space=vmem, size = 0x48000, scoped, tag = 'input window, operand 7, single buffered']
    #allocation14 [shape = 'u8[294912]{0}', space=vmem, size = 0x48000, scoped, tag = 'input window, operand 9, single buffered']
    #allocation15 [shape = 's32[1]{0}', space=sflag, size = 0x4, scoped, tag = 'scoped memory for tpu_custom_call.1']
    #allocation16 [shape = 'u8[98304]{0}', space=vmem, size = 0x18000, scoped, tag = 'input window, operand 11, single buffered']
    #allocation17 [shape = 'u8[4096]{0}', space=vmem, size = 0x1000, scoped, tag = 'output window, operand 0, single buffered']
    %18 = vsyncpa [#allocation3], 0
    %19 = vsyncpa [#allocation6], 0
    %20 = vsyncpa [#allocation9], 0
    %21 = vsyncpa [#allocation12], 0
    %22 = vsyncpa [#allocation15], 0
    %23 = vsyncpa [#allocation4], 0
    // Predicated region
    $region2: #{tpu_custom_call.1} parent=1 // pred_check
      _
    $region3: #{tpu_custom_call.1} parent=1 // pred_check_branch
      %25 = sbr.rel (0) target = $region5
    $region4: #{tpu_custom_call.1} parent=1 // pred_region
      %27 = vsyncadd [#allocation3], 0
      %s29 = sshll.u32 %s0, 4
      %s30 = int_to_ptr.hbm [resolvable:$true] %s29
      %s31 = sshll.u32 [#allocation2], 4
      %s32 = int_to_ptr.vmem [resolvable:$true] %s31
      %34 = dma.hbm_to_vmem [thread:$0]  %s30, 192, %s32, [#allocation3]
    $region5: #{tpu_custom_call.1} parent=1 // pred_fallthru
      _
    // Predicated region
    $region6: #{tpu_custom_call.1} parent=1 // pred_check
      _
    $region7: #{tpu_custom_call.1} parent=1 // pred_check_branch
      %36 = sbr.rel (0) target = $region9
    $region8: #{tpu_custom_call.1} parent=1 // pred_region
      %38 = vsyncadd [#allocation6], 0
      %s39 = sshll.u32 %s1, 4
      %s40 = int_to_ptr.hbm [resolvable:$true] %s39
      %s41 = sshll.u32 [#allocation5], 4
      %s42 = int_to_ptr.vmem [resolvable:$true] %s41
      %47 = dma.hbm_to_vmem [thread:$0]  %s40, 9216, %s42, [#allocation6], 192, 192, 12
    $region9: #{tpu_custom_call.1} parent=1 // pred_fallthru
      _
    // Predicated region
    $region10: #{tpu_custom_call.1} parent=1 // pred_check
      _
    $region11: #{tpu_custom_call.1} parent=1 // pred_check_branch
      %49 = sbr.rel (0) target = $region13
    $region12: #{tpu_custom_call.1} parent=1 // pred_region
      %51 = vsyncadd [#allocation6], 0
      %s53 = sshll.u32 %s2, 4
      %s54 = int_to_ptr.hbm [resolvable:$true] %s53
      %s55 = sshll.u32 [#allocation7], 4
      %s56 = int_to_ptr.vmem [resolvable:$true] %s55
      %58 = dma.hbm_to_vmem [thread:$0]  %s54, 48, %s56, [#allocation6]
    $region13: #{tpu_custom_call.1} parent=1 // pred_fallthru
      _
    // Predicated region
    $region14: #{tpu_custom_call.1} parent=1 // pred_check
      _
    $region15: #{tpu_custom_call.1} parent=1 // pred_check_branch
      %60 = sbr.rel (0) target = $region17
    $region16: #{tpu_custom_call.1} parent=1 // pred_region
      %62 = vsyncadd [#allocation9], 0
      %s63 = sshll.u32 %s3, 4
      %s64 = int_to_ptr.hbm [resolvable:$true] %s63
      %s65 = sshll.u32 [#allocation8], 4
      %s66 = int_to_ptr.vmem [resolvable:$true] %s65
      %71 = dma.hbm_to_vmem [thread:$0]  %s64, 9216, %s66, [#allocation9], 192, 192, 12
    $region17: #{tpu_custom_call.1} parent=1 // pred_fallthru
      _
    // Predicated region
    $region18: #{tpu_custom_call.1} parent=1 // pred_check
      _
    $region19: #{tpu_custom_call.1} parent=1 // pred_check_branch
      %73 = sbr.rel (0) target = $region21
    $region20: #{tpu_custom_call.1} parent=1 // pred_region
      _
    $region21: #{tpu_custom_call.1} parent=1 // pred_fallthru
      _
    // Predicated region
    $region22: #{tpu_custom_call.1} parent=1 // pred_check
      _
    $region23: #{tpu_custom_call.1} parent=1 // pred_check_branch
      %75 = sbr.rel (0) target = $region25
    $region24: #{tpu_custom_call.1} parent=1 // pred_region
      %77 = vsyncadd [#allocation9], 0
      %s78 = sshll.u32 %s5, 4
      %s79 = int_to_ptr.hbm [resolvable:$true] %s78
      %s80 = sshll.u32 [#allocation10], 4
      %s81 = int_to_ptr.vmem [resolvable:$true] %s80
      %86 = dma.hbm_to_vmem [thread:$0]  %s79, 9216, %s81, [#allocation9], 192, 192, 12
    $region25: #{tpu_custom_call.1} parent=1 // pred_fallthru
      _
    // Predicated region
    $region26: #{tpu_custom_call.1} parent=1 // pred_check
      _
    $region27: #{tpu_custom_call.1} parent=1 // pred_check_branch
      %88 = sbr.rel (0) target = $region29
    $region28: #{tpu_custom_call.1} parent=1 // pred_region
      %90 = vsyncadd [#allocation12], 0
      %s92 = sshll.u32 %s6, 4
      %s93 = int_to_ptr.hbm [resolvable:$true] %s92
      %s94 = sshll.u32 [#allocation11], 4
      %s95 = int_to_ptr.vmem [resolvable:$true] %s94
      %97 = dma.hbm_to_vmem [thread:$0]  %s93, 48, %s95, [#allocation12]
    $region29: #{tpu_custom_call.1} parent=1 // pred_fallthru
      _
    // Predicated region
    $region30: #{tpu_custom_call.1} parent=1 // pred_check
      _
    $region31: #{tpu_custom_call.1} parent=1 // pred_check_branch
      %99 = sbr.rel (0) target = $region33
    $region32: #{tpu_custom_call.1} parent=1 // pred_region
      %101 = vsyncadd [#allocation12], 0
      %s102 = sshll.u32 %s7, 4
      %s103 = int_to_ptr.hbm [resolvable:$true] %s102
      %s104 = sshll.u32 [#allocation13], 4
      %s105 = int_to_ptr.vmem [resolvable:$true] %s104
      %110 = dma.hbm_to_vmem [thread:$0]  %s103, 9216, %s105, [#allocation12], 192, 192, 12
    $region33: #{tpu_custom_call.1} parent=1 // pred_fallthru
      _
    // Predicated region
    $region34: #{tpu_custom_call.1} parent=1 // pred_check
      _
    $region35: #{tpu_custom_call.1} parent=1 // pred_check_branch
      %112 = sbr.rel (0) target = $region37
    $region36: #{tpu_custom_call.1} parent=1 // pred_region
      _
    $region37: #{tpu_custom_call.1} parent=1 // pred_fallthru
      _
    // Predicated region
    $region38: #{tpu_custom_call.1} parent=1 // pred_check
      _
    $region39: #{tpu_custom_call.1} parent=1 // pred_check_branch
      %114 = sbr.rel (0) target = $region41
    $region40: #{tpu_custom_call.1} parent=1 // pred_region
      %116 = vsyncadd [#allocation15], 0
      %s117 = sshll.u32 %s9, 4
      %s118 = int_to_ptr.hbm [resolvable:$true] %s117
      %s119 = sshll.u32 [#allocation14], 4
      %s120 = int_to_ptr.vmem [resolvable:$true] %s119
      %125 = dma.hbm_to_vmem [thread:$0]  %s118, 9216, %s120, [#allocation15], 192, 192, 12
    $region41: #{tpu_custom_call.1} parent=1 // pred_fallthru
      _
    // Predicated region
    $region42: #{tpu_custom_call.1} parent=1 // pred_check
      _
    $region43: #{tpu_custom_call.1} parent=1 // pred_check_branch
      %127 = sbr.rel (0) target = $region45
    $region44: #{tpu_custom_call.1} parent=1 // pred_region
      _
    $region45: #{tpu_custom_call.1} parent=1 // pred_fallthru
      _
    // Predicated region
    $region46: #{tpu_custom_call.1} parent=1 // pred_check
      _
    $region47: #{tpu_custom_call.1} parent=1 // pred_check_branch
      %129 = sbr.rel (0) target = $region49
    $region48: #{tpu_custom_call.1} parent=1 // pred_region
      %131 = vsyncadd [#allocation15], 0
      %s132 = sshll.u32 %s11, 4
      %s133 = int_to_ptr.hbm [resolvable:$true] %s132
      %s134 = sshll.u32 [#allocation16], 4
      %s135 = int_to_ptr.vmem [resolvable:$true] %s134
      %140 = dma.hbm_to_vmem [thread:$0]  %s133, 3072, %s135, [#allocation15], 64, 64, 4
    $region49: #{tpu_custom_call.1} parent=1 // pred_fallthru
      _
    // Predicated region
    $region50: #{tpu_custom_call.1} parent=1 // pred_check
      _
    $region51: #{tpu_custom_call.1} parent=1 // pred_check_branch
      %142 = sbr.rel (0) target = $region53
    $region52: #{tpu_custom_call.1} parent=1 // pred_region
      _
    $region53: #{tpu_custom_call.1} parent=1 // pred_fallthru
      _
    // Predicated region
    $region54: #{tpu_custom_call.1} parent=1 // pred_check
      _
    $region55: #{tpu_custom_call.1} parent=1 // pred_check_branch
      %144 = sbr.rel (0) target = $region57
    $region56: #{tpu_custom_call.1} parent=1 // pred_region
      %146 = dma.done [#allocation3], 192
    $region57: #{tpu_custom_call.1} parent=1 // pred_fallthru
      _
    // Predicated region
    $region58: #{tpu_custom_call.1} parent=1 // pred_check
      _
    $region59: #{tpu_custom_call.1} parent=1 // pred_check_branch
      %148 = sbr.rel (0) target = $region61
    $region60: #{tpu_custom_call.1} parent=1 // pred_region
      %150 = dma.done [#allocation6], 9216
    $region61: #{tpu_custom_call.1} parent=1 // pred_fallthru
      _
    // Predicated region
    $region62: #{tpu_custom_call.1} parent=1 // pred_check
      _
    $region63: #{tpu_custom_call.1} parent=1 // pred_check_branch
      %152 = sbr.rel (0) target = $region65
    $region64: #{tpu_custom_call.1} parent=1 // pred_region
      %154 = dma.done [#allocation6], 48
    $region65: #{tpu_custom_call.1} parent=1 // pred_fallthru
      _
    // Predicated region
    $region66: #{tpu_custom_call.1} parent=1 // pred_check
      _
    $region67: #{tpu_custom_call.1} parent=1 // pred_check_branch
      %156 = sbr.rel (0) target = $region69
    $region68: #{tpu_custom_call.1} parent=1 // pred_region
      %158 = dma.done [#allocation9], 9216
    $region69: #{tpu_custom_call.1} parent=1 // pred_fallthru
      _
    // Predicated region
    $region70: #{tpu_custom_call.1} parent=1 // pred_check
      _
    $region71: #{tpu_custom_call.1} parent=1 // pred_check_branch
      %160 = sbr.rel (0) target = $region73
    $region72: #{tpu_custom_call.1} parent=1 // pred_region
      %162 = dma.done [#allocation9], 9216
    $region73: #{tpu_custom_call.1} parent=1 // pred_fallthru
      _
    // Predicated region
    $region74: #{tpu_custom_call.1} parent=1 // pred_check
      _
    $region75: #{tpu_custom_call.1} parent=1 // pred_check_branch
      %164 = sbr.rel (0) target = $region77
    $region76: #{tpu_custom_call.1} parent=1 // pred_region
      %166 = dma.done [#allocation12], 48
    $region77: #{tpu_custom_call.1} parent=1 // pred_fallthru
      _
    // Predicated region
    $region78: #{tpu_custom_call.1} parent=1 // pred_check
      _
    $region79: #{tpu_custom_call.1} parent=1 // pred_check_branch
      %168 = sbr.rel (0) target = $region81
    $region80: #{tpu_custom_call.1} parent=1 // pred_region
      %170 = dma.done [#allocation12], 9216
    $region81: #{tpu_custom_call.1} parent=1 // pred_fallthru
      _
    // Predicated region
    $region82: #{tpu_custom_call.1} parent=1 // pred_check
      _
    $region83: #{tpu_custom_call.1} parent=1 // pred_check_branch
      %172 = sbr.rel (0) target = $region85
    $region84: #{tpu_custom_call.1} parent=1 // pred_region
      %174 = dma.done [#allocation15], 9216
    $region85: #{tpu_custom_call.1} parent=1 // pred_fallthru
      _
    // Predicated region
    $region86: #{tpu_custom_call.1} parent=1 // pred_check
      _
    $region87: #{tpu_custom_call.1} parent=1 // pred_check_branch
      %176 = sbr.rel (0) target = $region89
    $region88: #{tpu_custom_call.1} parent=1 // pred_region
      %178 = dma.done [#allocation15], 3072
    $region89: #{tpu_custom_call.1} parent=1 // pred_fallthru
      _
    %v179 = vld [vmem:[#allocation2] sm:$0xff]
    %v180 = vld [vmem:[#allocation2 + $0x8] sm:$0xf]
    %v181 = vld [vmem:[#allocation5] sm:$0xff]
    %v182 = vld [vmem:[#allocation5 + $0x8] sm:$0xf]
    %v183 = vld [vmem:[#allocation5 + $0xc] sm:$0xff]
    %v184 = vld [vmem:[#allocation5 + $0x14] sm:$0xf]
    %v185 = vld [vmem:[#allocation5 + $0x18] sm:$0xff]
    %v186 = vld [vmem:[#allocation5 + $0x20] sm:$0xf]
    %v187 = vld [vmem:[#allocation5 + $0x24] sm:$0xff]
    %v188 = vld [vmem:[#allocation5 + $0x2c] sm:$0xf]
    %v189 = vld [vmem:[#allocation5 + $0x30] sm:$0xff]
    %v190 = vld [vmem:[#allocation5 + $0x38] sm:$0xf]
    %v191 = vld [vmem:[#allocation5 + $0x3c] sm:$0xff]
    %v192 = vld [vmem:[#allocation5 + $0x44] sm:$0xf]
    %v193 = vld [vmem:[#allocation5 + $0x48] sm:$0xff]
    %v194 = vld [vmem:[#allocation5 + $0x50] sm:$0xf]
    %v195 = vld [vmem:[#allocation5 + $0x54] sm:$0xff]
    %v196 = vld [vmem:[#allocation5 + $0x5c] sm:$0xf]
    %v197 = vld [vmem:[#allocation5 + $0x60] sm:$0xff]
    %v198 = vld [vmem:[#allocation5 + $0x68] sm:$0xf]
    %v199 = vld [vmem:[#allocation5 + $0x6c] sm:$0xff]
    %v200 = vld [vmem:[#allocation5 + $0x74] sm:$0xf]
    %v201 = vld [vmem:[#allocation5 + $0x78] sm:$0xff]
    %v202 = vld [vmem:[#allocation5 + $0x80] sm:$0xf]
    %v203 = vld [vmem:[#allocation5 + $0x84] sm:$0xff]
    %v204 = vld [vmem:[#allocation5 + $0x8c] sm:$0xf]
    %v205 = vld [vmem:[#allocation5 + $0x90] sm:$0xff]
    %v206 = vld [vmem:[#allocation5 + $0x98] sm:$0xf]
    %v207 = vld [vmem:[#allocation5 + $0x9c] sm:$0xff]
    %v208 = vld [vmem:[#allocation5 + $0xa4] sm:$0xf]
    %v209 = vld [vmem:[#allocation5 + $0xa8] sm:$0xff]
    %v210 = vld [vmem:[#allocation5 + $0xb0] sm:$0xf]
    %v211 = vld [vmem:[#allocation5 + $0xb4] sm:$0xff]
    %v212 = vld [vmem:[#allocation5 + $0xbc] sm:$0xf]
    %v213 = vld [vmem:[#allocation5 + $0xc0] sm:$0xff]
    %v214 = vld [vmem:[#allocation5 + $0xc8] sm:$0xf]
    %v215 = vld [vmem:[#allocation5 + $0xcc] sm:$0xff]
    %v216 = vld [vmem:[#allocation5 + $0xd4] sm:$0xf]
    %v217 = vld [vmem:[#allocation5 + $0xd8] sm:$0xff]
    %v218 = vld [vmem:[#allocation5 + $0xe0] sm:$0xf]
    %v219 = vld [vmem:[#allocation5 + $0xe4] sm:$0xff]
    %v220 = vld [vmem:[#allocation5 + $0xec] sm:$0xf]
    %v221 = vld [vmem:[#allocation5 + $0xf0] sm:$0xff]
    %v222 = vld [vmem:[#allocation5 + $0xf8] sm:$0xf]
    %v223 = vld [vmem:[#allocation5 + $0xfc] sm:$0xff]
    %v224 = vld [vmem:[#allocation5 + $0x104] sm:$0xf]
    %v225 = vld [vmem:[#allocation5 + $0x108] sm:$0xff]
    %v226 = vld [vmem:[#allocation5 + $0x110] sm:$0xf]
    %v227 = vld [vmem:[#allocation5 + $0x114] sm:$0xff]
    %v228 = vld [vmem:[#allocation5 + $0x11c] sm:$0xf]
    %v229 = vld [vmem:[#allocation5 + $0x120] sm:$0xff]
    %v230 = vld [vmem:[#allocation5 + $0x128] sm:$0xf]
    %v231 = vld [vmem:[#allocation5 + $0x12c] sm:$0xff]
    %v232 = vld [vmem:[#allocation5 + $0x134] sm:$0xf]
    %v233 = vld [vmem:[#allocation5 + $0x138] sm:$0xff]
    %v234 = vld [vmem:[#allocation5 + $0x140] sm:$0xf]
    %v235 = vld [vmem:[#allocation5 + $0x144] sm:$0xff]
    %v236 = vld [vmem:[#allocation5 + $0x14c] sm:$0xf]
    %v237 = vld [vmem:[#allocation5 + $0x150] sm:$0xff]
    %v238 = vld [vmem:[#allocation5 + $0x158] sm:$0xf]
    %v239 = vld [vmem:[#allocation5 + $0x15c] sm:$0xff]
    %v240 = vld [vmem:[#allocation5 + $0x164] sm:$0xf]
    %v241 = vld [vmem:[#allocation5 + $0x168] sm:$0xff]
    %v242 = vld [vmem:[#allocation5 + $0x170] sm:$0xf]
    %v243 = vld [vmem:[#allocation5 + $0x174] sm:$0xff]
    %v244 = vld [vmem:[#allocation5 + $0x17c] sm:$0xf]
    %v245 = vld [vmem:[#allocation5 + $0x180] sm:$0xff]
    %v246 = vld [vmem:[#allocation5 + $0x188] sm:$0xf]
    %v247 = vld [vmem:[#allocation5 + $0x18c] sm:$0xff]
    %v248 = vld [vmem:[#allocation5 + $0x194] sm:$0xf]
    %v249 = vld [vmem:[#allocation5 + $0x198] sm:$0xff]
    %v250 = vld [vmem:[#allocation5 + $0x1a0] sm:$0xf]
    %v251 = vld [vmem:[#allocation5 + $0x1a4] sm:$0xff]
    %v252 = vld [vmem:[#allocation5 + $0x1ac] sm:$0xf]
    %v253 = vld [vmem:[#allocation5 + $0x1b0] sm:$0xff]
    %v254 = vld [vmem:[#allocation5 + $0x1b8] sm:$0xf]
    %v255 = vld [vmem:[#allocation5 + $0x1bc] sm:$0xff]
    %v256 = vld [vmem:[#allocation5 + $0x1c4] sm:$0xf]
    %v257 = vld [vmem:[#allocation5 + $0x1c8] sm:$0xff]
    %v258 = vld [vmem:[#allocation5 + $0x1d0] sm:$0xf]
    %v259 = vld [vmem:[#allocation5 + $0x1d4] sm:$0xff]
    %v260 = vld [vmem:[#allocation5 + $0x1dc] sm:$0xf]
    %v261 = vld [vmem:[#allocation5 + $0x1e0] sm:$0xff]
    %v262 = vld [vmem:[#allocation5 + $0x1e8] sm:$0xf]
    %v263 = vld [vmem:[#allocation5 + $0x1ec] sm:$0xff]
    %v264 = vld [vmem:[#allocation5 + $0x1f4] sm:$0xf]
    %v265 = vld [vmem:[#allocation5 + $0x1f8] sm:$0xff]
    %v266 = vld [vmem:[#allocation5 + $0x200] sm:$0xf]
    %v267 = vld [vmem:[#allocation5 + $0x204] sm:$0xff]
    %v268 = vld [vmem:[#allocation5 + $0x20c] sm:$0xf]
    %v269 = vld [vmem:[#allocation5 + $0x210] sm:$0xff]
    %v270 = vld [vmem:[#allocation5 + $0x218] sm:$0xf]
    %v271 = vld [vmem:[#allocation5 + $0x21c] sm:$0xff]
    %v272 = vld [vmem:[#allocation5 + $0x224] sm:$0xf]
    %v273 = vld [vmem:[#allocation5 + $0x228] sm:$0xff]
    %v274 = vld [vmem:[#allocation5 + $0x230] sm:$0xf]
    %v275 = vld [vmem:[#allocation5 + $0x234] sm:$0xff]
    %v276 = vld [vmem:[#allocation5 + $0x23c] sm:$0xf]
    %v277 = vld [vmem:[#allocation7] sm:$0x7]
    %v279 = vperm.slane %v277, 0
    %v280 = vperm.slane %v277, 1
    %v281 = vperm.slane %v277, 2
    %v287 = vunpack.c.l.b16 %v179
    %v288 = vunpack.c.h.b16 %v179
    %v289 = vunpack.c.l.b16 %v180
    %v290 = vpack.c.b16 %v287, %v287
    %v291 = vpack.c.b16 %v288, %v288
    %v292 = vpack.c.b16 %v289, %v289
    %v392 = vunpack.c.l.b16 %v181
    %v393 = vunpack.c.h.b16 %v181
    %v394 = vunpack.c.l.b16 %v182
    %v395 = vunpack.c.l.b16 %v183
    %v396 = vunpack.c.h.b16 %v183
    %v397 = vunpack.c.l.b16 %v184
    %v398 = vunpack.c.l.b16 %v185
    %v399 = vunpack.c.h.b16 %v185
    %v400 = vunpack.c.l.b16 %v186
    %v401 = vunpack.c.l.b16 %v187
    %v402 = vunpack.c.h.b16 %v187
    %v403 = vunpack.c.l.b16 %v188
    %v404 = vunpack.c.l.b16 %v189
    %v405 = vunpack.c.h.b16 %v189
    %v406 = vunpack.c.l.b16 %v190
    %v407 = vunpack.c.l.b16 %v191
    %v408 = vunpack.c.h.b16 %v191
    %v409 = vunpack.c.l.b16 %v192
    %v410 = vunpack.c.l.b16 %v193
    %v411 = vunpack.c.h.b16 %v193
    %v412 = vunpack.c.l.b16 %v194
    %v413 = vunpack.c.l.b16 %v195
    %v414 = vunpack.c.h.b16 %v195
    %v415 = vunpack.c.l.b16 %v196
    %v416 = vunpack.c.l.b16 %v197
    %v417 = vunpack.c.h.b16 %v197
    %v418 = vunpack.c.l.b16 %v198
    %v419 = vunpack.c.l.b16 %v199
    %v420 = vunpack.c.h.b16 %v199
    %v421 = vunpack.c.l.b16 %v200
    %v422 = vunpack.c.l.b16 %v201
    %v423 = vunpack.c.h.b16 %v201
    %v424 = vunpack.c.l.b16 %v202
    %v425 = vunpack.c.l.b16 %v203
    %v426 = vunpack.c.h.b16 %v203
    %v427 = vunpack.c.l.b16 %v204
    %v428 = vunpack.c.l.b16 %v205
    %v429 = vunpack.c.h.b16 %v205
    %v430 = vunpack.c.l.b16 %v206
    %v431 = vunpack.c.l.b16 %v207
    %v432 = vunpack.c.h.b16 %v207
    %v433 = vunpack.c.l.b16 %v208
    %v434 = vunpack.c.l.b16 %v209
    %v435 = vunpack.c.h.b16 %v209
    %v436 = vunpack.c.l.b16 %v210
    %v437 = vunpack.c.l.b16 %v211
    %v438 = vunpack.c.h.b16 %v211
    %v439 = vunpack.c.l.b16 %v212
    %v440 = vunpack.c.l.b16 %v213
    %v441 = vunpack.c.h.b16 %v213
    %v442 = vunpack.c.l.b16 %v214
    %v443 = vunpack.c.l.b16 %v215
    %v444 = vunpack.c.h.b16 %v215
    %v445 = vunpack.c.l.b16 %v216
    %v446 = vunpack.c.l.b16 %v217
    %v447 = vunpack.c.h.b16 %v217
    %v448 = vunpack.c.l.b16 %v218
    %v449 = vunpack.c.l.b16 %v219
    %v450 = vunpack.c.h.b16 %v219
    %v451 = vunpack.c.l.b16 %v220
    %v452 = vunpack.c.l.b16 %v221
    %v453 = vunpack.c.h.b16 %v221
    %v454 = vunpack.c.l.b16 %v222
    %v455 = vunpack.c.l.b16 %v223
    %v456 = vunpack.c.h.b16 %v223
    %v457 = vunpack.c.l.b16 %v224
    %v458 = vunpack.c.l.b16 %v225
    %v459 = vunpack.c.h.b16 %v225
    %v460 = vunpack.c.l.b16 %v226
    %v461 = vunpack.c.l.b16 %v227
    %v462 = vunpack.c.h.b16 %v227
    %v463 = vunpack.c.l.b16 %v228
    %v464 = vunpack.c.l.b16 %v229
    %v465 = vunpack.c.h.b16 %v229
    %v466 = vunpack.c.l.b16 %v230
    %v467 = vunpack.c.l.b16 %v231
    %v468 = vunpack.c.h.b16 %v231
    %v469 = vunpack.c.l.b16 %v232
    %v470 = vunpack.c.l.b16 %v233
    %v471 = vunpack.c.h.b16 %v233
    %v472 = vunpack.c.l.b16 %v234
    %v473 = vunpack.c.l.b16 %v235
    %v474 = vunpack.c.h.b16 %v235
    %v475 = vunpack.c.l.b16 %v236
    %v476 = vunpack.c.l.b16 %v237
    %v477 = vunpack.c.h.b16 %v237
    %v478 = vunpack.c.l.b16 %v238
    %v479 = vunpack.c.l.b16 %v239
    %v480 = vunpack.c.h.b16 %v239
    %v481 = vunpack.c.l.b16 %v240
    %v482 = vunpack.c.l.b16 %v241
    %v483 = vunpack.c.h.b16 %v241
    %v484 = vunpack.c.l.b16 %v242
    %v485 = vunpack.c.l.b16 %v243
    %v486 = vunpack.c.h.b16 %v243
    %v487 = vunpack.c.l.b16 %v244
    %v488 = vunpack.c.l.b16 %v245
    %v489 = vunpack.c.h.b16 %v245
    %v490 = vunpack.c.l.b16 %v246
    %v491 = vunpack.c.l.b16 %v247
    %v492 = vunpack.c.h.b16 %v247
    %v493 = vunpack.c.l.b16 %v248
    %v494 = vunpack.c.l.b16 %v249
    %v495 = vunpack.c.h.b16 %v249
    %v496 = vunpack.c.l.b16 %v250
    %v497 = vunpack.c.l.b16 %v251
    %v498 = vunpack.c.h.b16 %v251
    %v499 = vunpack.c.l.b16 %v252
    %v500 = vunpack.c.l.b16 %v253
    %v501 = vunpack.c.h.b16 %v253
    %v502 = vunpack.c.l.b16 %v254
    %v503 = vunpack.c.l.b16 %v255
    %v504 = vunpack.c.h.b16 %v255
    %v505 = vunpack.c.l.b16 %v256
    %v506 = vunpack.c.l.b16 %v257
    %v507 = vunpack.c.h.b16 %v257
    %v508 = vunpack.c.l.b16 %v258
    %v509 = vunpack.c.l.b16 %v259
    %v510 = vunpack.c.h.b16 %v259
    %v511 = vunpack.c.l.b16 %v260
    %v512 = vunpack.c.l.b16 %v261
    %v513 = vunpack.c.h.b16 %v261
    %v514 = vunpack.c.l.b16 %v262
    %v515 = vunpack.c.l.b16 %v263
    %v516 = vunpack.c.h.b16 %v263
    %v517 = vunpack.c.l.b16 %v264
    %v518 = vunpack.c.l.b16 %v265
    %v519 = vunpack.c.h.b16 %v265
    %v520 = vunpack.c.l.b16 %v266
    %v521 = vunpack.c.l.b16 %v267
    %v522 = vunpack.c.h.b16 %v267
    %v523 = vunpack.c.l.b16 %v268
    %v524 = vunpack.c.l.b16 %v269
    %v525 = vunpack.c.h.b16 %v269
    %v526 = vunpack.c.l.b16 %v270
    %v527 = vunpack.c.l.b16 %v271
    %v528 = vunpack.c.h.b16 %v271
    %v529 = vunpack.c.l.b16 %v272
    %v530 = vunpack.c.l.b16 %v273
    %v531 = vunpack.c.h.b16 %v273
    %v532 = vunpack.c.l.b16 %v274
    %v533 = vunpack.c.l.b16 %v275
    %v534 = vunpack.c.h.b16 %v275
    %v535 = vunpack.c.l.b16 %v276
    %v536 = vpack.c.b16 %v395, %v392
    %v537 = vpack.c.b16 %v396, %v393
    %v538 = vpack.c.b16 %v397, %v394
    %v539 = vpack.c.b16 %v401, %v398
    %v540 = vpack.c.b16 %v402, %v399
    %v541 = vpack.c.b16 %v403, %v400
    %v542 = vpack.c.b16 %v407, %v404
    %v543 = vpack.c.b16 %v408, %v405
    %v544 = vpack.c.b16 %v409, %v406
    %v545 = vpack.c.b16 %v413, %v410
    %v546 = vpack.c.b16 %v414, %v411
    %v547 = vpack.c.b16 %v415, %v412
    %v548 = vpack.c.b16 %v419, %v416
    %v549 = vpack.c.b16 %v420, %v417
    %v550 = vpack.c.b16 %v421, %v418
    %v551 = vpack.c.b16 %v425, %v422
    %v552 = vpack.c.b16 %v426, %v423
    %v553 = vpack.c.b16 %v427, %v424
    %v554 = vpack.c.b16 %v431, %v428
    %v555 = vpack.c.b16 %v432, %v429
    %v556 = vpack.c.b16 %v433, %v430
    %v557 = vpack.c.b16 %v437, %v434
    %v558 = vpack.c.b16 %v438, %v435
    %v559 = vpack.c.b16 %v439, %v436
    %v560 = vpack.c.b16 %v443, %v440
    %v561 = vpack.c.b16 %v444, %v441
    %v562 = vpack.c.b16 %v445, %v442
    %v563 = vpack.c.b16 %v449, %v446
    %v564 = vpack.c.b16 %v450, %v447
    %v565 = vpack.c.b16 %v451, %v448
    %v566 = vpack.c.b16 %v455, %v452
    %v567 = vpack.c.b16 %v456, %v453
    %v568 = vpack.c.b16 %v457, %v454
    %v569 = vpack.c.b16 %v461, %v458
    %v570 = vpack.c.b16 %v462, %v459
    %v571 = vpack.c.b16 %v463, %v460
    %v572 = vpack.c.b16 %v467, %v464
    %v573 = vpack.c.b16 %v468, %v465
    %v574 = vpack.c.b16 %v469, %v466
    %v575 = vpack.c.b16 %v473, %v470
    %v576 = vpack.c.b16 %v474, %v471
    %v577 = vpack.c.b16 %v475, %v472
    %v578 = vpack.c.b16 %v479, %v476
    %v579 = vpack.c.b16 %v480, %v477
    %v580 = vpack.c.b16 %v481, %v478
    %v581 = vpack.c.b16 %v485, %v482
    %v582 = vpack.c.b16 %v486, %v483
    %v583 = vpack.c.b16 %v487, %v484
    %v584 = vpack.c.b16 %v491, %v488
    %v585 = vpack.c.b16 %v492, %v489
    %v586 = vpack.c.b16 %v493, %v490
    %v587 = vpack.c.b16 %v497, %v494
    %v588 = vpack.c.b16 %v498, %v495
    %v589 = vpack.c.b16 %v499, %v496
    %v590 = vpack.c.b16 %v503, %v500
    %v591 = vpack.c.b16 %v504, %v501
    %v592 = vpack.c.b16 %v505, %v502
    %v593 = vpack.c.b16 %v509, %v506
    %v594 = vpack.c.b16 %v510, %v507
    %v595 = vpack.c.b16 %v511, %v508
    %v596 = vpack.c.b16 %v515, %v512
    %v597 = vpack.c.b16 %v516, %v513
    %v598 = vpack.c.b16 %v517, %v514
    %v599 = vpack.c.b16 %v521, %v518
    %v600 = vpack.c.b16 %v522, %v519
    %v601 = vpack.c.b16 %v523, %v520
    %v602 = vpack.c.b16 %v527, %v524
    %v603 = vpack.c.b16 %v528, %v525
    %v604 = vpack.c.b16 %v529, %v526
    %v605 = vpack.c.b16 %v533, %v530
    %v606 = vpack.c.b16 %v534, %v531
    %v607 = vpack.c.b16 %v535, %v532
    %680 = vmatpush.bf16.msra.mxu0 %v557
    %681 = vmatpush.bf16.msra.mxu0 %v554
    %682 = vmatpush.bf16.msra.mxu0 %v551
    %683 = vmatpush.bf16.msra.mxu0 %v548
    %684 = vmatpush.bf16.msra.mxu0 %v545
    %685 = vmatpush.bf16.msra.mxu0 %v542
    %686 = vmatpush.bf16.msra.mxu0 %v539
    %687 = vmatpush.bf16.msra.mxu0 %v536
    %688 = vmatmul.bf16.gmra.mxu0 %v290
    %v689 = vpop.f32.mrf.mxu0
    %v690 = vadd.f32 %v279, %v689
    %v691 = vpop.f32.mrf.mxu0
    %692 = vdwg.mxu0
    %693 = vmatpush.bf16.msra.mxu0 %v581
    %694 = vmatpush.bf16.msra.mxu0 %v578
    %695 = vmatpush.bf16.msra.mxu0 %v575
    %696 = vmatpush.bf16.msra.mxu0 %v572
    %697 = vmatpush.bf16.msra.mxu0 %v569
    %698 = vmatpush.bf16.msra.mxu0 %v566
    %699 = vmatpush.bf16.msra.mxu0 %v563
    %700 = vmatpush.bf16.msra.mxu0 %v560
    %701 = vmatmul.bf16.gmra.mxu0 %v291
    %v702 = vpop.f32.mrf.mxu0
    %v703 = vadd.f32 %v690, %v702
    %v704 = vpop.f32.mrf.mxu0
    %705 = vdwg.mxu0
    %706 = vmatpush.bf16.msra.mxu0 %v605
    %707 = vmatpush.bf16.msra.mxu0 %v602
    %708 = vmatpush.bf16.msra.mxu0 %v599
    %709 = vmatpush.bf16.msra.mxu0 %v596
    %710 = vmatpush.bf16.msra.mxu0 %v593
    %711 = vmatpush.bf16.msra.mxu0 %v590
    %712 = vmatpush.bf16.msra.mxu0 %v587
    %713 = vmatpush.bf16.msra.mxu0 %v584
    %714 = vmatmul.bf16.gmra.mxu0 %v292
    %v715 = vpop.f32.mrf.mxu0
    %v716 = vadd.f32 %v703, %v715
    %v717 = vpop.f32.mrf.mxu0
    %718 = vdwg.mxu0
    %719 = vmatpush.bf16.msra.mxu0 %v558
    %720 = vmatpush.bf16.msra.mxu0 %v555
    %721 = vmatpush.bf16.msra.mxu0 %v552
    %722 = vmatpush.bf16.msra.mxu0 %v549
    %723 = vmatpush.bf16.msra.mxu0 %v546
    %724 = vmatpush.bf16.msra.mxu0 %v543
    %725 = vmatpush.bf16.msra.mxu0 %v540
    %726 = vmatpush.bf16.msra.mxu0 %v537
    %727 = vmatmul.bf16.gmra.mxu0 %v290
    %v728 = vpop.f32.mrf.mxu0
    %v729 = vadd.f32 %v280, %v728
    %v730 = vpop.f32.mrf.mxu0
    %731 = vdwg.mxu0
    %732 = vmatpush.bf16.msra.mxu0 %v582
    %733 = vmatpush.bf16.msra.mxu0 %v579
    %734 = vmatpush.bf16.msra.mxu0 %v576
    %735 = vmatpush.bf16.msra.mxu0 %v573
    %736 = vmatpush.bf16.msra.mxu0 %v570
    %737 = vmatpush.bf16.msra.mxu0 %v567
    %738 = vmatpush.bf16.msra.mxu0 %v564
    %739 = vmatpush.bf16.msra.mxu0 %v561
    %740 = vmatmul.bf16.gmra.mxu0 %v291
    %v741 = vpop.f32.mrf.mxu0
    %v742 = vadd.f32 %v729, %v741
    %v743 = vpop.f32.mrf.mxu0
    %744 = vdwg.mxu0
    %745 = vmatpush.bf16.msra.mxu0 %v606
    %746 = vmatpush.bf16.msra.mxu0 %v603
    %747 = vmatpush.bf16.msra.mxu0 %v600
    %748 = vmatpush.bf16.msra.mxu0 %v597
    %749 = vmatpush.bf16.msra.mxu0 %v594
    %750 = vmatpush.bf16.msra.mxu0 %v591
    %751 = vmatpush.bf16.msra.mxu0 %v588
    %752 = vmatpush.bf16.msra.mxu0 %v585
    %753 = vmatmul.bf16.gmra.mxu0 %v292
    %v754 = vpop.f32.mrf.mxu0
    %v755 = vadd.f32 %v742, %v754
    %v756 = vpop.f32.mrf.mxu0
    %757 = vdwg.mxu0
    %758 = vmatpush.bf16.msra.mxu0 %v559
    %759 = vmatpush.bf16.msra.mxu0 %v556
    %760 = vmatpush.bf16.msra.mxu0 %v553
    %761 = vmatpush.bf16.msra.mxu0 %v550
    %762 = vmatpush.bf16.msra.mxu0 %v547
    %763 = vmatpush.bf16.msra.mxu0 %v544
    %764 = vmatpush.bf16.msra.mxu0 %v541
    %765 = vmatpush.bf16.msra.mxu0 %v538
    %766 = vmatmul.bf16.gmra.mxu0 %v290
    %v767 = vpop.f32.mrf.mxu0
    %v768 = vadd.f32 %v281, %v767
    %v769 = vpop.f32.mrf.mxu0
    %770 = vdwg.mxu0
    %771 = vmatpush.bf16.msra.mxu0 %v583
    %772 = vmatpush.bf16.msra.mxu0 %v580
    %773 = vmatpush.bf16.msra.mxu0 %v577
    %774 = vmatpush.bf16.msra.mxu0 %v574
    %775 = vmatpush.bf16.msra.mxu0 %v571
    %776 = vmatpush.bf16.msra.mxu0 %v568
    %777 = vmatpush.bf16.msra.mxu0 %v565
    %778 = vmatpush.bf16.msra.mxu0 %v562
    %779 = vmatmul.bf16.gmra.mxu0 %v291
    %v780 = vpop.f32.mrf.mxu0
    %v781 = vadd.f32 %v768, %v780
    %v782 = vpop.f32.mrf.mxu0
    %783 = vdwg.mxu0
    %784 = vmatpush.bf16.msra.mxu0 %v607
    %785 = vmatpush.bf16.msra.mxu0 %v604
    %786 = vmatpush.bf16.msra.mxu0 %v601
    %787 = vmatpush.bf16.msra.mxu0 %v598
    %788 = vmatpush.bf16.msra.mxu0 %v595
    %789 = vmatpush.bf16.msra.mxu0 %v592
    %790 = vmatpush.bf16.msra.mxu0 %v589
    %791 = vmatpush.bf16.msra.mxu0 %v586
    %792 = vmatmul.bf16.gmra.mxu0 %v292
    %v793 = vpop.f32.mrf.mxu0
    %v794 = vadd.f32 %v781, %v793
    %v795 = vpop.f32.mrf.mxu0
    %796 = vdwg.mxu0
    %v797 = vmul.f32 %v716, 0.01
    %v798 = vmul.f32 %v755, 0.01
    %v799 = vmul.f32 %v794, 0.01
    %v800 = vmax.f32 %v716, %v797
    %v801 = vmax.f32 %v755, %v798
    %v802 = vmax.f32 %v794, %v799
    %v803 = vpack.c.bf16 %v800, %v800
    %v804 = vpack.c.bf16 %v801, %v801
    %v805 = vpack.c.bf16 %v802, %v802
    %v806 = vld [vmem:[#allocation8] sm:$0xff]
    %v807 = vld [vmem:[#allocation8 + $0x8] sm:$0xf]
    %v808 = vld [vmem:[#allocation8 + $0xc] sm:$0xff]
    %v809 = vld [vmem:[#allocation8 + $0x14] sm:$0xf]
    %v810 = vld [vmem:[#allocation8 + $0x18] sm:$0xff]
    %v811 = vld [vmem:[#allocation8 + $0x20] sm:$0xf]
    %v812 = vld [vmem:[#allocation8 + $0x24] sm:$0xff]
    %v813 = vld [vmem:[#allocation8 + $0x2c] sm:$0xf]
    %v814 = vld [vmem:[#allocation8 + $0x30] sm:$0xff]
    %v815 = vld [vmem:[#allocation8 + $0x38] sm:$0xf]
    %v816 = vld [vmem:[#allocation8 + $0x3c] sm:$0xff]
    %v817 = vld [vmem:[#allocation8 + $0x44] sm:$0xf]
    %v818 = vld [vmem:[#allocation8 + $0x48] sm:$0xff]
    %v819 = vld [vmem:[#allocation8 + $0x50] sm:$0xf]
    %v820 = vld [vmem:[#allocation8 + $0x54] sm:$0xff]
    %v821 = vld [vmem:[#allocation8 + $0x5c] sm:$0xf]
    %v822 = vld [vmem:[#allocation8 + $0x60] sm:$0xff]
    %v823 = vld [vmem:[#allocation8 + $0x68] sm:$0xf]
    %v824 = vld [vmem:[#allocation8 + $0x6c] sm:$0xff]
    %v825 = vld [vmem:[#allocation8 + $0x74] sm:$0xf]
    %v826 = vld [vmem:[#allocation8 + $0x78] sm:$0xff]
    %v827 = vld [vmem:[#allocation8 + $0x80] sm:$0xf]
    %v828 = vld [vmem:[#allocation8 + $0x84] sm:$0xff]
    %v829 = vld [vmem:[#allocation8 + $0x8c] sm:$0xf]
    %v830 = vld [vmem:[#allocation8 + $0x90] sm:$0xff]
    %v831 = vld [vmem:[#allocation8 + $0x98] sm:$0xf]
    %v832 = vld [vmem:[#allocation8 + $0x9c] sm:$0xff]
    %v833 = vld [vmem:[#allocation8 + $0xa4] sm:$0xf]
    %v834 = vld [vmem:[#allocation8 + $0xa8] sm:$0xff]
    %v835 = vld [vmem:[#allocation8 + $0xb0] sm:$0xf]
    %v836 = vld [vmem:[#allocation8 + $0xb4] sm:$0xff]
    %v837 = vld [vmem:[#allocation8 + $0xbc] sm:$0xf]
    %v838 = vld [vmem:[#allocation8 + $0xc0] sm:$0xff]
    %v839 = vld [vmem:[#allocation8 + $0xc8] sm:$0xf]
    %v840 = vld [vmem:[#allocation8 + $0xcc] sm:$0xff]
    %v841 = vld [vmem:[#allocation8 + $0xd4] sm:$0xf]
    %v842 = vld [vmem:[#allocation8 + $0xd8] sm:$0xff]
    %v843 = vld [vmem:[#allocation8 + $0xe0] sm:$0xf]
    %v844 = vld [vmem:[#allocation8 + $0xe4] sm:$0xff]
    %v845 = vld [vmem:[#allocation8 + $0xec] sm:$0xf]
    %v846 = vld [vmem:[#allocation8 + $0xf0] sm:$0xff]
    %v847 = vld [vmem:[#allocation8 + $0xf8] sm:$0xf]
    %v848 = vld [vmem:[#allocation8 + $0xfc] sm:$0xff]
    %v849 = vld [vmem:[#allocation8 + $0x104] sm:$0xf]
    %v850 = vld [vmem:[#allocation8 + $0x108] sm:$0xff]
    %v851 = vld [vmem:[#allocation8 + $0x110] sm:$0xf]
    %v852 = vld [vmem:[#allocation8 + $0x114] sm:$0xff]
    %v853 = vld [vmem:[#allocation8 + $0x11c] sm:$0xf]
    %v854 = vld [vmem:[#allocation8 + $0x120] sm:$0xff]
    %v855 = vld [vmem:[#allocation8 + $0x128] sm:$0xf]
    %v856 = vld [vmem:[#allocation8 + $0x12c] sm:$0xff]
    %v857 = vld [vmem:[#allocation8 + $0x134] sm:$0xf]
    %v858 = vld [vmem:[#allocation8 + $0x138] sm:$0xff]
    %v859 = vld [vmem:[#allocation8 + $0x140] sm:$0xf]
    %v860 = vld [vmem:[#allocation8 + $0x144] sm:$0xff]
    %v861 = vld [vmem:[#allocation8 + $0x14c] sm:$0xf]
    %v862 = vld [vmem:[#allocation8 + $0x150] sm:$0xff]
    %v863 = vld [vmem:[#allocation8 + $0x158] sm:$0xf]
    %v864 = vld [vmem:[#allocation8 + $0x15c] sm:$0xff]
    %v865 = vld [vmem:[#allocation8 + $0x164] sm:$0xf]
    %v866 = vld [vmem:[#allocation8 + $0x168] sm:$0xff]
    %v867 = vld [vmem:[#allocation8 + $0x170] sm:$0xf]
    %v868 = vld [vmem:[#allocation8 + $0x174] sm:$0xff]
    %v869 = vld [vmem:[#allocation8 + $0x17c] sm:$0xf]
    %v870 = vld [vmem:[#allocation8 + $0x180] sm:$0xff]
    %v871 = vld [vmem:[#allocation8 + $0x188] sm:$0xf]
    %v872 = vld [vmem:[#allocation8 + $0x18c] sm:$0xff]
    %v873 = vld [vmem:[#allocation8 + $0x194] sm:$0xf]
    %v874 = vld [vmem:[#allocation8 + $0x198] sm:$0xff]
    %v875 = vld [vmem:[#allocation8 + $0x1a0] sm:$0xf]
    %v876 = vld [vmem:[#allocation8 + $0x1a4] sm:$0xff]
    %v877 = vld [vmem:[#allocation8 + $0x1ac] sm:$0xf]
    %v878 = vld [vmem:[#allocation8 + $0x1b0] sm:$0xff]
    %v879 = vld [vmem:[#allocation8 + $0x1b8] sm:$0xf]
    %v880 = vld [vmem:[#allocation8 + $0x1bc] sm:$0xff]
    %v881 = vld [vmem:[#allocation8 + $0x1c4] sm:$0xf]
    %v882 = vld [vmem:[#allocation8 + $0x1c8] sm:$0xff]
    %v883 = vld [vmem:[#allocation8 + $0x1d0] sm:$0xf]
    %v884 = vld [vmem:[#allocation8 + $0x1d4] sm:$0xff]
    %v885 = vld [vmem:[#allocation8 + $0x1dc] sm:$0xf]
    %v886 = vld [vmem:[#allocation8 + $0x1e0] sm:$0xff]
    %v887 = vld [vmem:[#allocation8 + $0x1e8] sm:$0xf]
    %v888 = vld [vmem:[#allocation8 + $0x1ec] sm:$0xff]
    %v889 = vld [vmem:[#allocation8 + $0x1f4] sm:$0xf]
    %v890 = vld [vmem:[#allocation8 + $0x1f8] sm:$0xff]
    %v891 = vld [vmem:[#allocation8 + $0x200] sm:$0xf]
    %v892 = vld [vmem:[#allocation8 + $0x204] sm:$0xff]
    %v893 = vld [vmem:[#allocation8 + $0x20c] sm:$0xf]
    %v894 = vld [vmem:[#allocation8 + $0x210] sm:$0xff]
    %v895 = vld [vmem:[#allocation8 + $0x218] sm:$0xf]
    %v896 = vld [vmem:[#allocation8 + $0x21c] sm:$0xff]
    %v897 = vld [vmem:[#allocation8 + $0x224] sm:$0xf]
    %v898 = vld [vmem:[#allocation8 + $0x228] sm:$0xff]
    %v899 = vld [vmem:[#allocation8 + $0x230] sm:$0xf]
    %v900 = vld [vmem:[#allocation8 + $0x234] sm:$0xff]
    %v901 = vld [vmem:[#allocation8 + $0x23c] sm:$0xf]
    %v902 = vld [vmem:[%s4] sm:$0x7]
    %v904 = vperm.slane %v902, 0
    %v905 = vperm.slane %v902, 1
    %v906 = vperm.slane %v902, 2
    %v1006 = vunpack.c.l.b16 %v806
    %v1007 = vunpack.c.h.b16 %v806
    %v1008 = vunpack.c.l.b16 %v807
    %v1009 = vunpack.c.l.b16 %v808
    %v1010 = vunpack.c.h.b16 %v808
    %v1011 = vunpack.c.l.b16 %v809
    %v1012 = vunpack.c.l.b16 %v810
    %v1013 = vunpack.c.h.b16 %v810
    %v1014 = vunpack.c.l.b16 %v811
    %v1015 = vunpack.c.l.b16 %v812
    %v1016 = vunpack.c.h.b16 %v812
    %v1017 = vunpack.c.l.b16 %v813
    %v1018 = vunpack.c.l.b16 %v814
    %v1019 = vunpack.c.h.b16 %v814
    %v1020 = vunpack.c.l.b16 %v815
    %v1021 = vunpack.c.l.b16 %v816
    %v1022 = vunpack.c.h.b16 %v816
    %v1023 = vunpack.c.l.b16 %v817
    %v1024 = vunpack.c.l.b16 %v818
    %v1025 = vunpack.c.h.b16 %v818
    %v1026 = vunpack.c.l.b16 %v819
    %v1027 = vunpack.c.l.b16 %v820
    %v1028 = vunpack.c.h.b16 %v820
    %v1029 = vunpack.c.l.b16 %v821
    %v1030 = vunpack.c.l.b16 %v822
    %v1031 = vunpack.c.h.b16 %v822
    %v1032 = vunpack.c.l.b16 %v823
    %v1033 = vunpack.c.l.b16 %v824
    %v1034 = vunpack.c.h.b16 %v824
    %v1035 = vunpack.c.l.b16 %v825
    %v1036 = vunpack.c.l.b16 %v826
    %v1037 = vunpack.c.h.b16 %v826
    %v1038 = vunpack.c.l.b16 %v827
    %v1039 = vunpack.c.l.b16 %v828
    %v1040 = vunpack.c.h.b16 %v828
    %v1041 = vunpack.c.l.b16 %v829
    %v1042 = vunpack.c.l.b16 %v830
    %v1043 = vunpack.c.h.b16 %v830
    %v1044 = vunpack.c.l.b16 %v831
    %v1045 = vunpack.c.l.b16 %v832
    %v1046 = vunpack.c.h.b16 %v832
    %v1047 = vunpack.c.l.b16 %v833
    %v1048 = vunpack.c.l.b16 %v834
    %v1049 = vunpack.c.h.b16 %v834
    %v1050 = vunpack.c.l.b16 %v835
    %v1051 = vunpack.c.l.b16 %v836
    %v1052 = vunpack.c.h.b16 %v836
    %v1053 = vunpack.c.l.b16 %v837
    %v1054 = vunpack.c.l.b16 %v838
    %v1055 = vunpack.c.h.b16 %v838
    %v1056 = vunpack.c.l.b16 %v839
    %v1057 = vunpack.c.l.b16 %v840
    %v1058 = vunpack.c.h.b16 %v840
    %v1059 = vunpack.c.l.b16 %v841
    %v1060 = vunpack.c.l.b16 %v842
    %v1061 = vunpack.c.h.b16 %v842
    %v1062 = vunpack.c.l.b16 %v843
    %v1063 = vunpack.c.l.b16 %v844
    %v1064 = vunpack.c.h.b16 %v844
    %v1065 = vunpack.c.l.b16 %v845
    %v1066 = vunpack.c.l.b16 %v846
    %v1067 = vunpack.c.h.b16 %v846
    %v1068 = vunpack.c.l.b16 %v847
    %v1069 = vunpack.c.l.b16 %v848
    %v1070 = vunpack.c.h.b16 %v848
    %v1071 = vunpack.c.l.b16 %v849
    %v1072 = vunpack.c.l.b16 %v850
    %v1073 = vunpack.c.h.b16 %v850
    %v1074 = vunpack.c.l.b16 %v851
    %v1075 = vunpack.c.l.b16 %v852
    %v1076 = vunpack.c.h.b16 %v852
    %v1077 = vunpack.c.l.b16 %v853
    %v1078 = vunpack.c.l.b16 %v854
    %v1079 = vunpack.c.h.b16 %v854
    %v1080 = vunpack.c.l.b16 %v855
    %v1081 = vunpack.c.l.b16 %v856
    %v1082 = vunpack.c.h.b16 %v856
    %v1083 = vunpack.c.l.b16 %v857
    %v1084 = vunpack.c.l.b16 %v858
    %v1085 = vunpack.c.h.b16 %v858
    %v1086 = vunpack.c.l.b16 %v859
    %v1087 = vunpack.c.l.b16 %v860
    %v1088 = vunpack.c.h.b16 %v860
    %v1089 = vunpack.c.l.b16 %v861
    %v1090 = vunpack.c.l.b16 %v862
    %v1091 = vunpack.c.h.b16 %v862
    %v1092 = vunpack.c.l.b16 %v863
    %v1093 = vunpack.c.l.b16 %v864
    %v1094 = vunpack.c.h.b16 %v864
    %v1095 = vunpack.c.l.b16 %v865
    %v1096 = vunpack.c.l.b16 %v866
    %v1097 = vunpack.c.h.b16 %v866
    %v1098 = vunpack.c.l.b16 %v867
    %v1099 = vunpack.c.l.b16 %v868
    %v1100 = vunpack.c.h.b16 %v868
    %v1101 = vunpack.c.l.b16 %v869
    %v1102 = vunpack.c.l.b16 %v870
    %v1103 = vunpack.c.h.b16 %v870
    %v1104 = vunpack.c.l.b16 %v871
    %v1105 = vunpack.c.l.b16 %v872
    %v1106 = vunpack.c.h.b16 %v872
    %v1107 = vunpack.c.l.b16 %v873
    %v1108 = vunpack.c.l.b16 %v874
    %v1109 = vunpack.c.h.b16 %v874
    %v1110 = vunpack.c.l.b16 %v875
    %v1111 = vunpack.c.l.b16 %v876
    %v1112 = vunpack.c.h.b16 %v876
    %v1113 = vunpack.c.l.b16 %v877
    %v1114 = vunpack.c.l.b16 %v878
    %v1115 = vunpack.c.h.b16 %v878
    %v1116 = vunpack.c.l.b16 %v879
    %v1117 = vunpack.c.l.b16 %v880
    %v1118 = vunpack.c.h.b16 %v880
    %v1119 = vunpack.c.l.b16 %v881
    %v1120 = vunpack.c.l.b16 %v882
    %v1121 = vunpack.c.h.b16 %v882
    %v1122 = vunpack.c.l.b16 %v883
    %v1123 = vunpack.c.l.b16 %v884
    %v1124 = vunpack.c.h.b16 %v884
    %v1125 = vunpack.c.l.b16 %v885
    %v1126 = vunpack.c.l.b16 %v886
    %v1127 = vunpack.c.h.b16 %v886
    %v1128 = vunpack.c.l.b16 %v887
    %v1129 = vunpack.c.l.b16 %v888
    %v1130 = vunpack.c.h.b16 %v888
    %v1131 = vunpack.c.l.b16 %v889
    %v1132 = vunpack.c.l.b16 %v890
    %v1133 = vunpack.c.h.b16 %v890
    %v1134 = vunpack.c.l.b16 %v891
    %v1135 = vunpack.c.l.b16 %v892
    %v1136 = vunpack.c.h.b16 %v892
    %v1137 = vunpack.c.l.b16 %v893
    %v1138 = vunpack.c.l.b16 %v894
    %v1139 = vunpack.c.h.b16 %v894
    %v1140 = vunpack.c.l.b16 %v895
    %v1141 = vunpack.c.l.b16 %v896
    %v1142 = vunpack.c.h.b16 %v896
    %v1143 = vunpack.c.l.b16 %v897
    %v1144 = vunpack.c.l.b16 %v898
    %v1145 = vunpack.c.h.b16 %v898
    %v1146 = vunpack.c.l.b16 %v899
    %v1147 = vunpack.c.l.b16 %v900
    %v1148 = vunpack.c.h.b16 %v900
    %v1149 = vunpack.c.l.b16 %v901
    %v1150 = vpack.c.b16 %v1009, %v1006
    %v1151 = vpack.c.b16 %v1010, %v1007
    %v1152 = vpack.c.b16 %v1011, %v1008
    %v1153 = vpack.c.b16 %v1015, %v1012
    %v1154 = vpack.c.b16 %v1016, %v1013
    %v1155 = vpack.c.b16 %v1017, %v1014
    %v1156 = vpack.c.b16 %v1021, %v1018
    %v1157 = vpack.c.b16 %v1022, %v1019
    %v1158 = vpack.c.b16 %v1023, %v1020
    %v1159 = vpack.c.b16 %v1027, %v1024
    %v1160 = vpack.c.b16 %v1028, %v1025
    %v1161 = vpack.c.b16 %v1029, %v1026
    %v1162 = vpack.c.b16 %v1033, %v1030
    %v1163 = vpack.c.b16 %v1034, %v1031
    %v1164 = vpack.c.b16 %v1035, %v1032
    %v1165 = vpack.c.b16 %v1039, %v1036
    %v1166 = vpack.c.b16 %v1040, %v1037
    %v1167 = vpack.c.b16 %v1041, %v1038
    %v1168 = vpack.c.b16 %v1045, %v1042
    %v1169 = vpack.c.b16 %v1046, %v1043
    %v1170 = vpack.c.b16 %v1047, %v1044
    %v1171 = vpack.c.b16 %v1051, %v1048
    %v1172 = vpack.c.b16 %v1052, %v1049
    %v1173 = vpack.c.b16 %v1053, %v1050
    %v1174 = vpack.c.b16 %v1057, %v1054
    %v1175 = vpack.c.b16 %v1058, %v1055
    %v1176 = vpack.c.b16 %v1059, %v1056
    %v1177 = vpack.c.b16 %v1063, %v1060
    %v1178 = vpack.c.b16 %v1064, %v1061
    %v1179 = vpack.c.b16 %v1065, %v1062
    %v1180 = vpack.c.b16 %v1069, %v1066
    %v1181 = vpack.c.b16 %v1070, %v1067
    %v1182 = vpack.c.b16 %v1071, %v1068
    %v1183 = vpack.c.b16 %v1075, %v1072
    %v1184 = vpack.c.b16 %v1076, %v1073
    %v1185 = vpack.c.b16 %v1077, %v1074
    %v1186 = vpack.c.b16 %v1081, %v1078
    %v1187 = vpack.c.b16 %v1082, %v1079
    %v1188 = vpack.c.b16 %v1083, %v1080
    %v1189 = vpack.c.b16 %v1087, %v1084
    %v1190 = vpack.c.b16 %v1088, %v1085
    %v1191 = vpack.c.b16 %v1089, %v1086
    %v1192 = vpack.c.b16 %v1093, %v1090
    %v1193 = vpack.c.b16 %v1094, %v1091
    %v1194 = vpack.c.b16 %v1095, %v1092
    %v1195 = vpack.c.b16 %v1099, %v1096
    %v1196 = vpack.c.b16 %v1100, %v1097
    %v1197 = vpack.c.b16 %v1101, %v1098
    %v1198 = vpack.c.b16 %v1105, %v1102
    %v1199 = vpack.c.b16 %v1106, %v1103
    %v1200 = vpack.c.b16 %v1107, %v1104
    %v1201 = vpack.c.b16 %v1111, %v1108
    %v1202 = vpack.c.b16 %v1112, %v1109
    %v1203 = vpack.c.b16 %v1113, %v1110
    %v1204 = vpack.c.b16 %v1117, %v1114
    %v1205 = vpack.c.b16 %v1118, %v1115
    %v1206 = vpack.c.b16 %v1119, %v1116
    %v1207 = vpack.c.b16 %v1123, %v1120
    %v1208 = vpack.c.b16 %v1124, %v1121
    %v1209 = vpack.c.b16 %v1125, %v1122
    %v1210 = vpack.c.b16 %v1129, %v1126
    %v1211 = vpack.c.b16 %v1130, %v1127
    %v1212 = vpack.c.b16 %v1131, %v1128
    %v1213 = vpack.c.b16 %v1135, %v1132
    %v1214 = vpack.c.b16 %v1136, %v1133
    %v1215 = vpack.c.b16 %v1137, %v1134
    %v1216 = vpack.c.b16 %v1141, %v1138
    %v1217 = vpack.c.b16 %v1142, %v1139
    %v1218 = vpack.c.b16 %v1143, %v1140
    %v1219 = vpack.c.b16 %v1147, %v1144
    %v1220 = vpack.c.b16 %v1148, %v1145
    %v1221 = vpack.c.b16 %v1149, %v1146
    %1294 = vmatpush.bf16.msra.mxu0 %v1171
    %1295 = vmatpush.bf16.msra.mxu0 %v1168
    %1296 = vmatpush.bf16.msra.mxu0 %v1165
    %1297 = vmatpush.bf16.msra.mxu0 %v1162
    %1298 = vmatpush.bf16.msra.mxu0 %v1159
    %1299 = vmatpush.bf16.msra.mxu0 %v1156
    %1300 = vmatpush.bf16.msra.mxu0 %v1153
    %1301 = vmatpush.bf16.msra.mxu0 %v1150
    %1302 = vmatmul.bf16.gmra.mxu0 %v803
    %v1303 = vpop.f32.mrf.mxu0
    %v1304 = vadd.f32 %v904, %v1303
    %v1305 = vpop.f32.mrf.mxu0
    %1306 = vdwg.mxu0
    %1307 = vmatpush.bf16.msra.mxu0 %v1195
    %1308 = vmatpush.bf16.msra.mxu0 %v1192
    %1309 = vmatpush.bf16.msra.mxu0 %v1189
    %1310 = vmatpush.bf16.msra.mxu0 %v1186
    %1311 = vmatpush.bf16.msra.mxu0 %v1183
    %1312 = vmatpush.bf16.msra.mxu0 %v1180
    %1313 = vmatpush.bf16.msra.mxu0 %v1177
    %1314 = vmatpush.bf16.msra.mxu0 %v1174
    %1315 = vmatmul.bf16.gmra.mxu0 %v804
    %v1316 = vpop.f32.mrf.mxu0
    %v1317 = vadd.f32 %v1304, %v1316
    %v1318 = vpop.f32.mrf.mxu0
    %1319 = vdwg.mxu0
    %1320 = vmatpush.bf16.msra.mxu0 %v1219
    %1321 = vmatpush.bf16.msra.mxu0 %v1216
    %1322 = vmatpush.bf16.msra.mxu0 %v1213
    %1323 = vmatpush.bf16.msra.mxu0 %v1210
    %1324 = vmatpush.bf16.msra.mxu0 %v1207
    %1325 = vmatpush.bf16.msra.mxu0 %v1204
    %1326 = vmatpush.bf16.msra.mxu0 %v1201
    %1327 = vmatpush.bf16.msra.mxu0 %v1198
    %1328 = vmatmul.bf16.gmra.mxu0 %v805
    %v1329 = vpop.f32.mrf.mxu0
    %v1330 = vadd.f32 %v1317, %v1329
    %v1331 = vpop.f32.mrf.mxu0
    %1332 = vdwg.mxu0
    %1333 = vmatpush.bf16.msra.mxu0 %v1172
    %1334 = vmatpush.bf16.msra.mxu0 %v1169
    %1335 = vmatpush.bf16.msra.mxu0 %v1166
    %1336 = vmatpush.bf16.msra.mxu0 %v1163
    %1337 = vmatpush.bf16.msra.mxu0 %v1160
    %1338 = vmatpush.bf16.msra.mxu0 %v1157
    %1339 = vmatpush.bf16.msra.mxu0 %v1154
    %1340 = vmatpush.bf16.msra.mxu0 %v1151
    %1341 = vmatmul.bf16.gmra.mxu0 %v803
    %v1342 = vpop.f32.mrf.mxu0
    %v1343 = vadd.f32 %v905, %v1342
    %v1344 = vpop.f32.mrf.mxu0
    %1345 = vdwg.mxu0
    %1346 = vmatpush.bf16.msra.mxu0 %v1196
    %1347 = vmatpush.bf16.msra.mxu0 %v1193
    %1348 = vmatpush.bf16.msra.mxu0 %v1190
    %1349 = vmatpush.bf16.msra.mxu0 %v1187
    %1350 = vmatpush.bf16.msra.mxu0 %v1184
    %1351 = vmatpush.bf16.msra.mxu0 %v1181
    %1352 = vmatpush.bf16.msra.mxu0 %v1178
    %1353 = vmatpush.bf16.msra.mxu0 %v1175
    %1354 = vmatmul.bf16.gmra.mxu0 %v804
    %v1355 = vpop.f32.mrf.mxu0
    %v1356 = vadd.f32 %v1343, %v1355
    %v1357 = vpop.f32.mrf.mxu0
    %1358 = vdwg.mxu0
    %1359 = vmatpush.bf16.msra.mxu0 %v1220
    %1360 = vmatpush.bf16.msra.mxu0 %v1217
    %1361 = vmatpush.bf16.msra.mxu0 %v1214
    %1362 = vmatpush.bf16.msra.mxu0 %v1211
    %1363 = vmatpush.bf16.msra.mxu0 %v1208
    %1364 = vmatpush.bf16.msra.mxu0 %v1205
    %1365 = vmatpush.bf16.msra.mxu0 %v1202
    %1366 = vmatpush.bf16.msra.mxu0 %v1199
    %1367 = vmatmul.bf16.gmra.mxu0 %v805
    %v1368 = vpop.f32.mrf.mxu0
    %v1369 = vadd.f32 %v1356, %v1368
    %v1370 = vpop.f32.mrf.mxu0
    %1371 = vdwg.mxu0
    %1372 = vmatpush.bf16.msra.mxu0 %v1173
    %1373 = vmatpush.bf16.msra.mxu0 %v1170
    %1374 = vmatpush.bf16.msra.mxu0 %v1167
    %1375 = vmatpush.bf16.msra.mxu0 %v1164
    %1376 = vmatpush.bf16.msra.mxu0 %v1161
    %1377 = vmatpush.bf16.msra.mxu0 %v1158
    %1378 = vmatpush.bf16.msra.mxu0 %v1155
    %1379 = vmatpush.bf16.msra.mxu0 %v1152
    %1380 = vmatmul.bf16.gmra.mxu0 %v803
    %v1381 = vpop.f32.mrf.mxu0
    %v1382 = vadd.f32 %v906, %v1381
    %v1383 = vpop.f32.mrf.mxu0
    %1384 = vdwg.mxu0
    %1385 = vmatpush.bf16.msra.mxu0 %v1197
    %1386 = vmatpush.bf16.msra.mxu0 %v1194
    %1387 = vmatpush.bf16.msra.mxu0 %v1191
    %1388 = vmatpush.bf16.msra.mxu0 %v1188
    %1389 = vmatpush.bf16.msra.mxu0 %v1185
    %1390 = vmatpush.bf16.msra.mxu0 %v1182
    %1391 = vmatpush.bf16.msra.mxu0 %v1179
    %1392 = vmatpush.bf16.msra.mxu0 %v1176
    %1393 = vmatmul.bf16.gmra.mxu0 %v804
    %v1394 = vpop.f32.mrf.mxu0
    %v1395 = vadd.f32 %v1382, %v1394
    %v1396 = vpop.f32.mrf.mxu0
    %1397 = vdwg.mxu0
    %1398 = vmatpush.bf16.msra.mxu0 %v1221
    %1399 = vmatpush.bf16.msra.mxu0 %v1218
    %1400 = vmatpush.bf16.msra.mxu0 %v1215
    %1401 = vmatpush.bf16.msra.mxu0 %v1212
    %1402 = vmatpush.bf16.msra.mxu0 %v1209
    %1403 = vmatpush.bf16.msra.mxu0 %v1206
    %1404 = vmatpush.bf16.msra.mxu0 %v1203
    %1405 = vmatpush.bf16.msra.mxu0 %v1200
    %1406 = vmatmul.bf16.gmra.mxu0 %v805
    %v1407 = vpop.f32.mrf.mxu0
    %v1408 = vadd.f32 %v1395, %v1407
    %v1409 = vpop.f32.mrf.mxu0
    %1410 = vdwg.mxu0
    %v1411 = vmul.f32 %v1330, 0.01
    %v1412 = vmul.f32 %v1369, 0.01
    %v1413 = vmul.f32 %v1408, 0.01
    %v1414 = vmax.f32 %v1330, %v1411
    %v1415 = vmax.f32 %v1369, %v1412
    %v1416 = vmax.f32 %v1408, %v1413
    %v1417 = vpack.c.bf16 %v1414, %v1414
    %v1418 = vpack.c.bf16 %v1415, %v1415
    %v1419 = vpack.c.bf16 %v1416, %v1416
    %v1420 = vld [vmem:[#allocation10] sm:$0xff]
    %v1421 = vld [vmem:[#allocation10 + $0x8] sm:$0xf]
    %v1422 = vld [vmem:[#allocation10 + $0xc] sm:$0xff]
    %v1423 = vld [vmem:[#allocation10 + $0x14] sm:$0xf]
    %v1424 = vld [vmem:[#allocation10 + $0x18] sm:$0xff]
    %v1425 = vld [vmem:[#allocation10 + $0x20] sm:$0xf]
    %v1426 = vld [vmem:[#allocation10 + $0x24] sm:$0xff]
    %v1427 = vld [vmem:[#allocation10 + $0x2c] sm:$0xf]
    %v1428 = vld [vmem:[#allocation10 + $0x30] sm:$0xff]
    %v1429 = vld [vmem:[#allocation10 + $0x38] sm:$0xf]
    %v1430 = vld [vmem:[#allocation10 + $0x3c] sm:$0xff]
    %v1431 = vld [vmem:[#allocation10 + $0x44] sm:$0xf]
    %v1432 = vld [vmem:[#allocation10 + $0x48] sm:$0xff]
    %v1433 = vld [vmem:[#allocation10 + $0x50] sm:$0xf]
    %v1434 = vld [vmem:[#allocation10 + $0x54] sm:$0xff]
    %v1435 = vld [vmem:[#allocation10 + $0x5c] sm:$0xf]
    %v1436 = vld [vmem:[#allocation10 + $0x60] sm:$0xff]
    %v1437 = vld [vmem:[#allocation10 + $0x68] sm:$0xf]
    %v1438 = vld [vmem:[#allocation10 + $0x6c] sm:$0xff]
    %v1439 = vld [vmem:[#allocation10 + $0x74] sm:$0xf]
    %v1440 = vld [vmem:[#allocation10 + $0x78] sm:$0xff]
    %v1441 = vld [vmem:[#allocation10 + $0x80] sm:$0xf]
    %v1442 = vld [vmem:[#allocation10 + $0x84] sm:$0xff]
    %v1443 = vld [vmem:[#allocation10 + $0x8c] sm:$0xf]
    %v1444 = vld [vmem:[#allocation10 + $0x90] sm:$0xff]
    %v1445 = vld [vmem:[#allocation10 + $0x98] sm:$0xf]
    %v1446 = vld [vmem:[#allocation10 + $0x9c] sm:$0xff]
    %v1447 = vld [vmem:[#allocation10 + $0xa4] sm:$0xf]
    %v1448 = vld [vmem:[#allocation10 + $0xa8] sm:$0xff]
    %v1449 = vld [vmem:[#allocation10 + $0xb0] sm:$0xf]
    %v1450 = vld [vmem:[#allocation10 + $0xb4] sm:$0xff]
    %v1451 = vld [vmem:[#allocation10 + $0xbc] sm:$0xf]
    %v1452 = vld [vmem:[#allocation10 + $0xc0] sm:$0xff]
    %v1453 = vld [vmem:[#allocation10 + $0xc8] sm:$0xf]
    %v1454 = vld [vmem:[#allocation10 + $0xcc] sm:$0xff]
    %v1455 = vld [vmem:[#allocation10 + $0xd4] sm:$0xf]
    %v1456 = vld [vmem:[#allocation10 + $0xd8] sm:$0xff]
    %v1457 = vld [vmem:[#allocation10 + $0xe0] sm:$0xf]
    %v1458 = vld [vmem:[#allocation10 + $0xe4] sm:$0xff]
    %v1459 = vld [vmem:[#allocation10 + $0xec] sm:$0xf]
    %v1460 = vld [vmem:[#allocation10 + $0xf0] sm:$0xff]
    %v1461 = vld [vmem:[#allocation10 + $0xf8] sm:$0xf]
    %v1462 = vld [vmem:[#allocation10 + $0xfc] sm:$0xff]
    %v1463 = vld [vmem:[#allocation10 + $0x104] sm:$0xf]
    %v1464 = vld [vmem:[#allocation10 + $0x108] sm:$0xff]
    %v1465 = vld [vmem:[#allocation10 + $0x110] sm:$0xf]
    %v1466 = vld [vmem:[#allocation10 + $0x114] sm:$0xff]
    %v1467 = vld [vmem:[#allocation10 + $0x11c] sm:$0xf]
    %v1468 = vld [vmem:[#allocation10 + $0x120] sm:$0xff]
    %v1469 = vld [vmem:[#allocation10 + $0x128] sm:$0xf]
    %v1470 = vld [vmem:[#allocation10 + $0x12c] sm:$0xff]
    %v1471 = vld [vmem:[#allocation10 + $0x134] sm:$0xf]
    %v1472 = vld [vmem:[#allocation10 + $0x138] sm:$0xff]
    %v1473 = vld [vmem:[#allocation10 + $0x140] sm:$0xf]
    %v1474 = vld [vmem:[#allocation10 + $0x144] sm:$0xff]
    %v1475 = vld [vmem:[#allocation10 + $0x14c] sm:$0xf]
    %v1476 = vld [vmem:[#allocation10 + $0x150] sm:$0xff]
    %v1477 = vld [vmem:[#allocation10 + $0x158] sm:$0xf]
    %v1478 = vld [vmem:[#allocation10 + $0x15c] sm:$0xff]
    %v1479 = vld [vmem:[#allocation10 + $0x164] sm:$0xf]
    %v1480 = vld [vmem:[#allocation10 + $0x168] sm:$0xff]
    %v1481 = vld [vmem:[#allocation10 + $0x170] sm:$0xf]
    %v1482 = vld [vmem:[#allocation10 + $0x174] sm:$0xff]
    %v1483 = vld [vmem:[#allocation10 + $0x17c] sm:$0xf]
    %v1484 = vld [vmem:[#allocation10 + $0x180] sm:$0xff]
    %v1485 = vld [vmem:[#allocation10 + $0x188] sm:$0xf]
    %v1486 = vld [vmem:[#allocation10 + $0x18c] sm:$0xff]
    %v1487 = vld [vmem:[#allocation10 + $0x194] sm:$0xf]
    %v1488 = vld [vmem:[#allocation10 + $0x198] sm:$0xff]
    %v1489 = vld [vmem:[#allocation10 + $0x1a0] sm:$0xf]
    %v1490 = vld [vmem:[#allocation10 + $0x1a4] sm:$0xff]
    %v1491 = vld [vmem:[#allocation10 + $0x1ac] sm:$0xf]
    %v1492 = vld [vmem:[#allocation10 + $0x1b0] sm:$0xff]
    %v1493 = vld [vmem:[#allocation10 + $0x1b8] sm:$0xf]
    %v1494 = vld [vmem:[#allocation10 + $0x1bc] sm:$0xff]
    %v1495 = vld [vmem:[#allocation10 + $0x1c4] sm:$0xf]
    %v1496 = vld [vmem:[#allocation10 + $0x1c8] sm:$0xff]
    %v1497 = vld [vmem:[#allocation10 + $0x1d0] sm:$0xf]
    %v1498 = vld [vmem:[#allocation10 + $0x1d4] sm:$0xff]
    %v1499 = vld [vmem:[#allocation10 + $0x1dc] sm:$0xf]
    %v1500 = vld [vmem:[#allocation10 + $0x1e0] sm:$0xff]
    %v1501 = vld [vmem:[#allocation10 + $0x1e8] sm:$0xf]
    %v1502 = vld [vmem:[#allocation10 + $0x1ec] sm:$0xff]
    %v1503 = vld [vmem:[#allocation10 + $0x1f4] sm:$0xf]
    %v1504 = vld [vmem:[#allocation10 + $0x1f8] sm:$0xff]
    %v1505 = vld [vmem:[#allocation10 + $0x200] sm:$0xf]
    %v1506 = vld [vmem:[#allocation10 + $0x204] sm:$0xff]
    %v1507 = vld [vmem:[#allocation10 + $0x20c] sm:$0xf]
    %v1508 = vld [vmem:[#allocation10 + $0x210] sm:$0xff]
    %v1509 = vld [vmem:[#allocation10 + $0x218] sm:$0xf]
    %v1510 = vld [vmem:[#allocation10 + $0x21c] sm:$0xff]
    %v1511 = vld [vmem:[#allocation10 + $0x224] sm:$0xf]
    %v1512 = vld [vmem:[#allocation10 + $0x228] sm:$0xff]
    %v1513 = vld [vmem:[#allocation10 + $0x230] sm:$0xf]
    %v1514 = vld [vmem:[#allocation10 + $0x234] sm:$0xff]
    %v1515 = vld [vmem:[#allocation10 + $0x23c] sm:$0xf]
    %v1516 = vld [vmem:[#allocation11] sm:$0x7]
    %v1518 = vperm.slane %v1516, 0
    %v1519 = vperm.slane %v1516, 1
    %v1520 = vperm.slane %v1516, 2
    %v1620 = vunpack.c.l.b16 %v1420
    %v1621 = vunpack.c.h.b16 %v1420
    %v1622 = vunpack.c.l.b16 %v1421
    %v1623 = vunpack.c.l.b16 %v1422
    %v1624 = vunpack.c.h.b16 %v1422
    %v1625 = vunpack.c.l.b16 %v1423
    %v1626 = vunpack.c.l.b16 %v1424
    %v1627 = vunpack.c.h.b16 %v1424
    %v1628 = vunpack.c.l.b16 %v1425
    %v1629 = vunpack.c.l.b16 %v1426
    %v1630 = vunpack.c.h.b16 %v1426
    %v1631 = vunpack.c.l.b16 %v1427
    %v1632 = vunpack.c.l.b16 %v1428
    %v1633 = vunpack.c.h.b16 %v1428
    %v1634 = vunpack.c.l.b16 %v1429
    %v1635 = vunpack.c.l.b16 %v1430
    %v1636 = vunpack.c.h.b16 %v1430
    %v1637 = vunpack.c.l.b16 %v1431
    %v1638 = vunpack.c.l.b16 %v1432
    %v1639 = vunpack.c.h.b16 %v1432
    %v1640 = vunpack.c.l.b16 %v1433
    %v1641 = vunpack.c.l.b16 %v1434
    %v1642 = vunpack.c.h.b16 %v1434
    %v1643 = vunpack.c.l.b16 %v1435
    %v1644 = vunpack.c.l.b16 %v1436
    %v1645 = vunpack.c.h.b16 %v1436
    %v1646 = vunpack.c.l.b16 %v1437
    %v1647 = vunpack.c.l.b16 %v1438
    %v1648 = vunpack.c.h.b16 %v1438
    %v1649 = vunpack.c.l.b16 %v1439
    %v1650 = vunpack.c.l.b16 %v1440
    %v1651 = vunpack.c.h.b16 %v1440
    %v1652 = vunpack.c.l.b16 %v1441
    %v1653 = vunpack.c.l.b16 %v1442
    %v1654 = vunpack.c.h.b16 %v1442
    %v1655 = vunpack.c.l.b16 %v1443
    %v1656 = vunpack.c.l.b16 %v1444
    %v1657 = vunpack.c.h.b16 %v1444
    %v1658 = vunpack.c.l.b16 %v1445
    %v1659 = vunpack.c.l.b16 %v1446
    %v1660 = vunpack.c.h.b16 %v1446
    %v1661 = vunpack.c.l.b16 %v1447
    %v1662 = vunpack.c.l.b16 %v1448
    %v1663 = vunpack.c.h.b16 %v1448
    %v1664 = vunpack.c.l.b16 %v1449
    %v1665 = vunpack.c.l.b16 %v1450
    %v1666 = vunpack.c.h.b16 %v1450
    %v1667 = vunpack.c.l.b16 %v1451
    %v1668 = vunpack.c.l.b16 %v1452
    %v1669 = vunpack.c.h.b16 %v1452
    %v1670 = vunpack.c.l.b16 %v1453
    %v1671 = vunpack.c.l.b16 %v1454
    %v1672 = vunpack.c.h.b16 %v1454
    %v1673 = vunpack.c.l.b16 %v1455
    %v1674 = vunpack.c.l.b16 %v1456
    %v1675 = vunpack.c.h.b16 %v1456
    %v1676 = vunpack.c.l.b16 %v1457
    %v1677 = vunpack.c.l.b16 %v1458
    %v1678 = vunpack.c.h.b16 %v1458
    %v1679 = vunpack.c.l.b16 %v1459
    %v1680 = vunpack.c.l.b16 %v1460
    %v1681 = vunpack.c.h.b16 %v1460
    %v1682 = vunpack.c.l.b16 %v1461
    %v1683 = vunpack.c.l.b16 %v1462
    %v1684 = vunpack.c.h.b16 %v1462
    %v1685 = vunpack.c.l.b16 %v1463
    %v1686 = vunpack.c.l.b16 %v1464
    %v1687 = vunpack.c.h.b16 %v1464
    %v1688 = vunpack.c.l.b16 %v1465
    %v1689 = vunpack.c.l.b16 %v1466
    %v1690 = vunpack.c.h.b16 %v1466
    %v1691 = vunpack.c.l.b16 %v1467
    %v1692 = vunpack.c.l.b16 %v1468
    %v1693 = vunpack.c.h.b16 %v1468
    %v1694 = vunpack.c.l.b16 %v1469
    %v1695 = vunpack.c.l.b16 %v1470
    %v1696 = vunpack.c.h.b16 %v1470
    %v1697 = vunpack.c.l.b16 %v1471
    %v1698 = vunpack.c.l.b16 %v1472
    %v1699 = vunpack.c.h.b16 %v1472
    %v1700 = vunpack.c.l.b16 %v1473
    %v1701 = vunpack.c.l.b16 %v1474
    %v1702 = vunpack.c.h.b16 %v1474
    %v1703 = vunpack.c.l.b16 %v1475
    %v1704 = vunpack.c.l.b16 %v1476
    %v1705 = vunpack.c.h.b16 %v1476
    %v1706 = vunpack.c.l.b16 %v1477
    %v1707 = vunpack.c.l.b16 %v1478
    %v1708 = vunpack.c.h.b16 %v1478
    %v1709 = vunpack.c.l.b16 %v1479
    %v1710 = vunpack.c.l.b16 %v1480
    %v1711 = vunpack.c.h.b16 %v1480
    %v1712 = vunpack.c.l.b16 %v1481
    %v1713 = vunpack.c.l.b16 %v1482
    %v1714 = vunpack.c.h.b16 %v1482
    %v1715 = vunpack.c.l.b16 %v1483
    %v1716 = vunpack.c.l.b16 %v1484
    %v1717 = vunpack.c.h.b16 %v1484
    %v1718 = vunpack.c.l.b16 %v1485
    %v1719 = vunpack.c.l.b16 %v1486
    %v1720 = vunpack.c.h.b16 %v1486
    %v1721 = vunpack.c.l.b16 %v1487
    %v1722 = vunpack.c.l.b16 %v1488
    %v1723 = vunpack.c.h.b16 %v1488
    %v1724 = vunpack.c.l.b16 %v1489
    %v1725 = vunpack.c.l.b16 %v1490
    %v1726 = vunpack.c.h.b16 %v1490
    %v1727 = vunpack.c.l.b16 %v1491
    %v1728 = vunpack.c.l.b16 %v1492
    %v1729 = vunpack.c.h.b16 %v1492
    %v1730 = vunpack.c.l.b16 %v1493
    %v1731 = vunpack.c.l.b16 %v1494
    %v1732 = vunpack.c.h.b16 %v1494
    %v1733 = vunpack.c.l.b16 %v1495
    %v1734 = vunpack.c.l.b16 %v1496
    %v1735 = vunpack.c.h.b16 %v1496
    %v1736 = vunpack.c.l.b16 %v1497
    %v1737 = vunpack.c.l.b16 %v1498
    %v1738 = vunpack.c.h.b16 %v1498
    %v1739 = vunpack.c.l.b16 %v1499
    %v1740 = vunpack.c.l.b16 %v1500
    %v1741 = vunpack.c.h.b16 %v1500
    %v1742 = vunpack.c.l.b16 %v1501
    %v1743 = vunpack.c.l.b16 %v1502
    %v1744 = vunpack.c.h.b16 %v1502
    %v1745 = vunpack.c.l.b16 %v1503
    %v1746 = vunpack.c.l.b16 %v1504
    %v1747 = vunpack.c.h.b16 %v1504
    %v1748 = vunpack.c.l.b16 %v1505
    %v1749 = vunpack.c.l.b16 %v1506
    %v1750 = vunpack.c.h.b16 %v1506
    %v1751 = vunpack.c.l.b16 %v1507
    %v1752 = vunpack.c.l.b16 %v1508
    %v1753 = vunpack.c.h.b16 %v1508
    %v1754 = vunpack.c.l.b16 %v1509
    %v1755 = vunpack.c.l.b16 %v1510
    %v1756 = vunpack.c.h.b16 %v1510
    %v1757 = vunpack.c.l.b16 %v1511
    %v1758 = vunpack.c.l.b16 %v1512
    %v1759 = vunpack.c.h.b16 %v1512
    %v1760 = vunpack.c.l.b16 %v1513
    %v1761 = vunpack.c.l.b16 %v1514
    %v1762 = vunpack.c.h.b16 %v1514
    %v1763 = vunpack.c.l.b16 %v1515
    %v1764 = vpack.c.b16 %v1623, %v1620
    %v1765 = vpack.c.b16 %v1624, %v1621
    %v1766 = vpack.c.b16 %v1625, %v1622
    %v1767 = vpack.c.b16 %v1629, %v1626
    %v1768 = vpack.c.b16 %v1630, %v1627
    %v1769 = vpack.c.b16 %v1631, %v1628
    %v1770 = vpack.c.b16 %v1635, %v1632
    %v1771 = vpack.c.b16 %v1636, %v1633
    %v1772 = vpack.c.b16 %v1637, %v1634
    %v1773 = vpack.c.b16 %v1641, %v1638
    %v1774 = vpack.c.b16 %v1642, %v1639
    %v1775 = vpack.c.b16 %v1643, %v1640
    %v1776 = vpack.c.b16 %v1647, %v1644
    %v1777 = vpack.c.b16 %v1648, %v1645
    %v1778 = vpack.c.b16 %v1649, %v1646
    %v1779 = vpack.c.b16 %v1653, %v1650
    %v1780 = vpack.c.b16 %v1654, %v1651
    %v1781 = vpack.c.b16 %v1655, %v1652
    %v1782 = vpack.c.b16 %v1659, %v1656
    %v1783 = vpack.c.b16 %v1660, %v1657
    %v1784 = vpack.c.b16 %v1661, %v1658
    %v1785 = vpack.c.b16 %v1665, %v1662
    %v1786 = vpack.c.b16 %v1666, %v1663
    %v1787 = vpack.c.b16 %v1667, %v1664
    %v1788 = vpack.c.b16 %v1671, %v1668
    %v1789 = vpack.c.b16 %v1672, %v1669
    %v1790 = vpack.c.b16 %v1673, %v1670
    %v1791 = vpack.c.b16 %v1677, %v1674
    %v1792 = vpack.c.b16 %v1678, %v1675
    %v1793 = vpack.c.b16 %v1679, %v1676
    %v1794 = vpack.c.b16 %v1683, %v1680
    %v1795 = vpack.c.b16 %v1684, %v1681
    %v1796 = vpack.c.b16 %v1685, %v1682
    %v1797 = vpack.c.b16 %v1689, %v1686
    %v1798 = vpack.c.b16 %v1690, %v1687
    %v1799 = vpack.c.b16 %v1691, %v1688
    %v1800 = vpack.c.b16 %v1695, %v1692
    %v1801 = vpack.c.b16 %v1696, %v1693
    %v1802 = vpack.c.b16 %v1697, %v1694
    %v1803 = vpack.c.b16 %v1701, %v1698
    %v1804 = vpack.c.b16 %v1702, %v1699
    %v1805 = vpack.c.b16 %v1703, %v1700
    %v1806 = vpack.c.b16 %v1707, %v1704
    %v1807 = vpack.c.b16 %v1708, %v1705
    %v1808 = vpack.c.b16 %v1709, %v1706
    %v1809 = vpack.c.b16 %v1713, %v1710
    %v1810 = vpack.c.b16 %v1714, %v1711
    %v1811 = vpack.c.b16 %v1715, %v1712
    %v1812 = vpack.c.b16 %v1719, %v1716
    %v1813 = vpack.c.b16 %v1720, %v1717
    %v1814 = vpack.c.b16 %v1721, %v1718
    %v1815 = vpack.c.b16 %v1725, %v1722
    %v1816 = vpack.c.b16 %v1726, %v1723
    %v1817 = vpack.c.b16 %v1727, %v1724
    %v1818 = vpack.c.b16 %v1731, %v1728
    %v1819 = vpack.c.b16 %v1732, %v1729
    %v1820 = vpack.c.b16 %v1733, %v1730
    %v1821 = vpack.c.b16 %v1737, %v1734
    %v1822 = vpack.c.b16 %v1738, %v1735
    %v1823 = vpack.c.b16 %v1739, %v1736
    %v1824 = vpack.c.b16 %v1743, %v1740
    %v1825 = vpack.c.b16 %v1744, %v1741
    %v1826 = vpack.c.b16 %v1745, %v1742
    %v1827 = vpack.c.b16 %v1749, %v1746
    %v1828 = vpack.c.b16 %v1750, %v1747
    %v1829 = vpack.c.b16 %v1751, %v1748
    %v1830 = vpack.c.b16 %v1755, %v1752
    %v1831 = vpack.c.b16 %v1756, %v1753
    %v1832 = vpack.c.b16 %v1757, %v1754
    %v1833 = vpack.c.b16 %v1761, %v1758
    %v1834 = vpack.c.b16 %v1762, %v1759
    %v1835 = vpack.c.b16 %v1763, %v1760
    %1908 = vmatpush.bf16.msra.mxu0 %v1785
    %1909 = vmatpush.bf16.msra.mxu0 %v1782
    %1910 = vmatpush.bf16.msra.mxu0 %v1779
    %1911 = vmatpush.bf16.msra.mxu0 %v1776
    %1912 = vmatpush.bf16.msra.mxu0 %v1773
    %1913 = vmatpush.bf16.msra.mxu0 %v1770
    %1914 = vmatpush.bf16.msra.mxu0 %v1767
    %1915 = vmatpush.bf16.msra.mxu0 %v1764
    %1916 = vmatmul.bf16.gmra.mxu0 %v1417
    %v1917 = vpop.f32.mrf.mxu0
    %v1918 = vadd.f32 %v1518, %v1917
    %v1919 = vpop.f32.mrf.mxu0
    %1920 = vdwg.mxu0
    %1921 = vmatpush.bf16.msra.mxu0 %v1809
    %1922 = vmatpush.bf16.msra.mxu0 %v1806
    %1923 = vmatpush.bf16.msra.mxu0 %v1803
    %1924 = vmatpush.bf16.msra.mxu0 %v1800
    %1925 = vmatpush.bf16.msra.mxu0 %v1797
    %1926 = vmatpush.bf16.msra.mxu0 %v1794
    %1927 = vmatpush.bf16.msra.mxu0 %v1791
    %1928 = vmatpush.bf16.msra.mxu0 %v1788
    %1929 = vmatmul.bf16.gmra.mxu0 %v1418
    %v1930 = vpop.f32.mrf.mxu0
    %v1931 = vadd.f32 %v1918, %v1930
    %v1932 = vpop.f32.mrf.mxu0
    %1933 = vdwg.mxu0
    %1934 = vmatpush.bf16.msra.mxu0 %v1833
    %1935 = vmatpush.bf16.msra.mxu0 %v1830
    %1936 = vmatpush.bf16.msra.mxu0 %v1827
    %1937 = vmatpush.bf16.msra.mxu0 %v1824
    %1938 = vmatpush.bf16.msra.mxu0 %v1821
    %1939 = vmatpush.bf16.msra.mxu0 %v1818
    %1940 = vmatpush.bf16.msra.mxu0 %v1815
    %1941 = vmatpush.bf16.msra.mxu0 %v1812
    %1942 = vmatmul.bf16.gmra.mxu0 %v1419
    %v1943 = vpop.f32.mrf.mxu0
    %v1944 = vadd.f32 %v1931, %v1943
    %v1945 = vpop.f32.mrf.mxu0
    %1946 = vdwg.mxu0
    %1947 = vmatpush.bf16.msra.mxu0 %v1786
    %1948 = vmatpush.bf16.msra.mxu0 %v1783
    %1949 = vmatpush.bf16.msra.mxu0 %v1780
    %1950 = vmatpush.bf16.msra.mxu0 %v1777
    %1951 = vmatpush.bf16.msra.mxu0 %v1774
    %1952 = vmatpush.bf16.msra.mxu0 %v1771
    %1953 = vmatpush.bf16.msra.mxu0 %v1768
    %1954 = vmatpush.bf16.msra.mxu0 %v1765
    %1955 = vmatmul.bf16.gmra.mxu0 %v1417
    %v1956 = vpop.f32.mrf.mxu0
    %v1957 = vadd.f32 %v1519, %v1956
    %v1958 = vpop.f32.mrf.mxu0
    %1959 = vdwg.mxu0
    %1960 = vmatpush.bf16.msra.mxu0 %v1810
    %1961 = vmatpush.bf16.msra.mxu0 %v1807
    %1962 = vmatpush.bf16.msra.mxu0 %v1804
    %1963 = vmatpush.bf16.msra.mxu0 %v1801
    %1964 = vmatpush.bf16.msra.mxu0 %v1798
    %1965 = vmatpush.bf16.msra.mxu0 %v1795
    %1966 = vmatpush.bf16.msra.mxu0 %v1792
    %1967 = vmatpush.bf16.msra.mxu0 %v1789
    %1968 = vmatmul.bf16.gmra.mxu0 %v1418
    %v1969 = vpop.f32.mrf.mxu0
    %v1970 = vadd.f32 %v1957, %v1969
    %v1971 = vpop.f32.mrf.mxu0
    %1972 = vdwg.mxu0
    %1973 = vmatpush.bf16.msra.mxu0 %v1834
    %1974 = vmatpush.bf16.msra.mxu0 %v1831
    %1975 = vmatpush.bf16.msra.mxu0 %v1828
    %1976 = vmatpush.bf16.msra.mxu0 %v1825
    %1977 = vmatpush.bf16.msra.mxu0 %v1822
    %1978 = vmatpush.bf16.msra.mxu0 %v1819
    %1979 = vmatpush.bf16.msra.mxu0 %v1816
    %1980 = vmatpush.bf16.msra.mxu0 %v1813
    %1981 = vmatmul.bf16.gmra.mxu0 %v1419
    %v1982 = vpop.f32.mrf.mxu0
    %v1983 = vadd.f32 %v1970, %v1982
    %v1984 = vpop.f32.mrf.mxu0
    %1985 = vdwg.mxu0
    %1986 = vmatpush.bf16.msra.mxu0 %v1787
    %1987 = vmatpush.bf16.msra.mxu0 %v1784
    %1988 = vmatpush.bf16.msra.mxu0 %v1781
    %1989 = vmatpush.bf16.msra.mxu0 %v1778
    %1990 = vmatpush.bf16.msra.mxu0 %v1775
    %1991 = vmatpush.bf16.msra.mxu0 %v1772
    %1992 = vmatpush.bf16.msra.mxu0 %v1769
    %1993 = vmatpush.bf16.msra.mxu0 %v1766
    %1994 = vmatmul.bf16.gmra.mxu0 %v1417
    %v1995 = vpop.f32.mrf.mxu0
    %v1996 = vadd.f32 %v1520, %v1995
    %v1997 = vpop.f32.mrf.mxu0
    %1998 = vdwg.mxu0
    %1999 = vmatpush.bf16.msra.mxu0 %v1811
    %2000 = vmatpush.bf16.msra.mxu0 %v1808
    %2001 = vmatpush.bf16.msra.mxu0 %v1805
    %2002 = vmatpush.bf16.msra.mxu0 %v1802
    %2003 = vmatpush.bf16.msra.mxu0 %v1799
    %2004 = vmatpush.bf16.msra.mxu0 %v1796
    %2005 = vmatpush.bf16.msra.mxu0 %v1793
    %2006 = vmatpush.bf16.msra.mxu0 %v1790
    %2007 = vmatmul.bf16.gmra.mxu0 %v1418
    %v2008 = vpop.f32.mrf.mxu0
    %v2009 = vadd.f32 %v1996, %v2008
    %v2010 = vpop.f32.mrf.mxu0
    %2011 = vdwg.mxu0
    %2012 = vmatpush.bf16.msra.mxu0 %v1835
    %2013 = vmatpush.bf16.msra.mxu0 %v1832
    %2014 = vmatpush.bf16.msra.mxu0 %v1829
    %2015 = vmatpush.bf16.msra.mxu0 %v1826
    %2016 = vmatpush.bf16.msra.mxu0 %v1823
    %2017 = vmatpush.bf16.msra.mxu0 %v1820
    %2018 = vmatpush.bf16.msra.mxu0 %v1817
    %2019 = vmatpush.bf16.msra.mxu0 %v1814
    %2020 = vmatmul.bf16.gmra.mxu0 %v1419
    %v2021 = vpop.f32.mrf.mxu0
    %v2022 = vadd.f32 %v2009, %v2021
    %v2023 = vpop.f32.mrf.mxu0
    %2024 = vdwg.mxu0
    %v2025 = vmul.f32 %v1944, 0.01
    %v2026 = vmul.f32 %v1983, 0.01
    %v2027 = vmul.f32 %v2022, 0.01
    %v2028 = vmax.f32 %v1944, %v2025
    %v2029 = vmax.f32 %v1983, %v2026
    %v2030 = vmax.f32 %v2022, %v2027
    %v2031 = vpack.c.bf16 %v2028, %v2028
    %v2032 = vpack.c.bf16 %v2029, %v2029
    %v2033 = vpack.c.bf16 %v2030, %v2030
    %v2034 = vld [vmem:[#allocation13] sm:$0xff]
    %v2035 = vld [vmem:[#allocation13 + $0x8] sm:$0xf]
    %v2036 = vld [vmem:[#allocation13 + $0xc] sm:$0xff]
    %v2037 = vld [vmem:[#allocation13 + $0x14] sm:$0xf]
    %v2038 = vld [vmem:[#allocation13 + $0x18] sm:$0xff]
    %v2039 = vld [vmem:[#allocation13 + $0x20] sm:$0xf]
    %v2040 = vld [vmem:[#allocation13 + $0x24] sm:$0xff]
    %v2041 = vld [vmem:[#allocation13 + $0x2c] sm:$0xf]
    %v2042 = vld [vmem:[#allocation13 + $0x30] sm:$0xff]
    %v2043 = vld [vmem:[#allocation13 + $0x38] sm:$0xf]
    %v2044 = vld [vmem:[#allocation13 + $0x3c] sm:$0xff]
    %v2045 = vld [vmem:[#allocation13 + $0x44] sm:$0xf]
    %v2046 = vld [vmem:[#allocation13 + $0x48] sm:$0xff]
    %v2047 = vld [vmem:[#allocation13 + $0x50] sm:$0xf]
    %v2048 = vld [vmem:[#allocation13 + $0x54] sm:$0xff]
    %v2049 = vld [vmem:[#allocation13 + $0x5c] sm:$0xf]
    %v2050 = vld [vmem:[#allocation13 + $0x60] sm:$0xff]
    %v2051 = vld [vmem:[#allocation13 + $0x68] sm:$0xf]
    %v2052 = vld [vmem:[#allocation13 + $0x6c] sm:$0xff]
    %v2053 = vld [vmem:[#allocation13 + $0x74] sm:$0xf]
    %v2054 = vld [vmem:[#allocation13 + $0x78] sm:$0xff]
    %v2055 = vld [vmem:[#allocation13 + $0x80] sm:$0xf]
    %v2056 = vld [vmem:[#allocation13 + $0x84] sm:$0xff]
    %v2057 = vld [vmem:[#allocation13 + $0x8c] sm:$0xf]
    %v2058 = vld [vmem:[#allocation13 + $0x90] sm:$0xff]
    %v2059 = vld [vmem:[#allocation13 + $0x98] sm:$0xf]
    %v2060 = vld [vmem:[#allocation13 + $0x9c] sm:$0xff]
    %v2061 = vld [vmem:[#allocation13 + $0xa4] sm:$0xf]
    %v2062 = vld [vmem:[#allocation13 + $0xa8] sm:$0xff]
    %v2063 = vld [vmem:[#allocation13 + $0xb0] sm:$0xf]
    %v2064 = vld [vmem:[#allocation13 + $0xb4] sm:$0xff]
    %v2065 = vld [vmem:[#allocation13 + $0xbc] sm:$0xf]
    %v2066 = vld [vmem:[#allocation13 + $0xc0] sm:$0xff]
    %v2067 = vld [vmem:[#allocation13 + $0xc8] sm:$0xf]
    %v2068 = vld [vmem:[#allocation13 + $0xcc] sm:$0xff]
    %v2069 = vld [vmem:[#allocation13 + $0xd4] sm:$0xf]
    %v2070 = vld [vmem:[#allocation13 + $0xd8] sm:$0xff]
    %v2071 = vld [vmem:[#allocation13 + $0xe0] sm:$0xf]
    %v2072 = vld [vmem:[#allocation13 + $0xe4] sm:$0xff]
    %v2073 = vld [vmem:[#allocation13 + $0xec] sm:$0xf]
    %v2074 = vld [vmem:[#allocation13 + $0xf0] sm:$0xff]
    %v2075 = vld [vmem:[#allocation13 + $0xf8] sm:$0xf]
    %v2076 = vld [vmem:[#allocation13 + $0xfc] sm:$0xff]
    %v2077 = vld [vmem:[#allocation13 + $0x104] sm:$0xf]
    %v2078 = vld [vmem:[#allocation13 + $0x108] sm:$0xff]
    %v2079 = vld [vmem:[#allocation13 + $0x110] sm:$0xf]
    %v2080 = vld [vmem:[#allocation13 + $0x114] sm:$0xff]
    %v2081 = vld [vmem:[#allocation13 + $0x11c] sm:$0xf]
    %v2082 = vld [vmem:[#allocation13 + $0x120] sm:$0xff]
    %v2083 = vld [vmem:[#allocation13 + $0x128] sm:$0xf]
    %v2084 = vld [vmem:[#allocation13 + $0x12c] sm:$0xff]
    %v2085 = vld [vmem:[#allocation13 + $0x134] sm:$0xf]
    %v2086 = vld [vmem:[#allocation13 + $0x138] sm:$0xff]
    %v2087 = vld [vmem:[#allocation13 + $0x140] sm:$0xf]
    %v2088 = vld [vmem:[#allocation13 + $0x144] sm:$0xff]
    %v2089 = vld [vmem:[#allocation13 + $0x14c] sm:$0xf]
    %v2090 = vld [vmem:[#allocation13 + $0x150] sm:$0xff]
    %v2091 = vld [vmem:[#allocation13 + $0x158] sm:$0xf]
    %v2092 = vld [vmem:[#allocation13 + $0x15c] sm:$0xff]
    %v2093 = vld [vmem:[#allocation13 + $0x164] sm:$0xf]
    %v2094 = vld [vmem:[#allocation13 + $0x168] sm:$0xff]
    %v2095 = vld [vmem:[#allocation13 + $0x170] sm:$0xf]
    %v2096 = vld [vmem:[#allocation13 + $0x174] sm:$0xff]
    %v2097 = vld [vmem:[#allocation13 + $0x17c] sm:$0xf]
    %v2098 = vld [vmem:[#allocation13 + $0x180] sm:$0xff]
    %v2099 = vld [vmem:[#allocation13 + $0x188] sm:$0xf]
    %v2100 = vld [vmem:[#allocation13 + $0x18c] sm:$0xff]
    %v2101 = vld [vmem:[#allocation13 + $0x194] sm:$0xf]
    %v2102 = vld [vmem:[#allocation13 + $0x198] sm:$0xff]
    %v2103 = vld [vmem:[#allocation13 + $0x1a0] sm:$0xf]
    %v2104 = vld [vmem:[#allocation13 + $0x1a4] sm:$0xff]
    %v2105 = vld [vmem:[#allocation13 + $0x1ac] sm:$0xf]
    %v2106 = vld [vmem:[#allocation13 + $0x1b0] sm:$0xff]
    %v2107 = vld [vmem:[#allocation13 + $0x1b8] sm:$0xf]
    %v2108 = vld [vmem:[#allocation13 + $0x1bc] sm:$0xff]
    %v2109 = vld [vmem:[#allocation13 + $0x1c4] sm:$0xf]
    %v2110 = vld [vmem:[#allocation13 + $0x1c8] sm:$0xff]
    %v2111 = vld [vmem:[#allocation13 + $0x1d0] sm:$0xf]
    %v2112 = vld [vmem:[#allocation13 + $0x1d4] sm:$0xff]
    %v2113 = vld [vmem:[#allocation13 + $0x1dc] sm:$0xf]
    %v2114 = vld [vmem:[#allocation13 + $0x1e0] sm:$0xff]
    %v2115 = vld [vmem:[#allocation13 + $0x1e8] sm:$0xf]
    %v2116 = vld [vmem:[#allocation13 + $0x1ec] sm:$0xff]
    %v2117 = vld [vmem:[#allocation13 + $0x1f4] sm:$0xf]
    %v2118 = vld [vmem:[#allocation13 + $0x1f8] sm:$0xff]
    %v2119 = vld [vmem:[#allocation13 + $0x200] sm:$0xf]
    %v2120 = vld [vmem:[#allocation13 + $0x204] sm:$0xff]
    %v2121 = vld [vmem:[#allocation13 + $0x20c] sm:$0xf]
    %v2122 = vld [vmem:[#allocation13 + $0x210] sm:$0xff]
    %v2123 = vld [vmem:[#allocation13 + $0x218] sm:$0xf]
    %v2124 = vld [vmem:[#allocation13 + $0x21c] sm:$0xff]
    %v2125 = vld [vmem:[#allocation13 + $0x224] sm:$0xf]
    %v2126 = vld [vmem:[#allocation13 + $0x228] sm:$0xff]
    %v2127 = vld [vmem:[#allocation13 + $0x230] sm:$0xf]
    %v2128 = vld [vmem:[#allocation13 + $0x234] sm:$0xff]
    %v2129 = vld [vmem:[#allocation13 + $0x23c] sm:$0xf]
    %v2130 = vld [vmem:[%s8] sm:$0x7]
    %v2132 = vperm.slane %v2130, 0
    %v2133 = vperm.slane %v2130, 1
    %v2134 = vperm.slane %v2130, 2
    %v2234 = vunpack.c.l.b16 %v2034
    %v2235 = vunpack.c.h.b16 %v2034
    %v2236 = vunpack.c.l.b16 %v2035
    %v2237 = vunpack.c.l.b16 %v2036
    %v2238 = vunpack.c.h.b16 %v2036
    %v2239 = vunpack.c.l.b16 %v2037
    %v2240 = vunpack.c.l.b16 %v2038
    %v2241 = vunpack.c.h.b16 %v2038
    %v2242 = vunpack.c.l.b16 %v2039
    %v2243 = vunpack.c.l.b16 %v2040
    %v2244 = vunpack.c.h.b16 %v2040
    %v2245 = vunpack.c.l.b16 %v2041
    %v2246 = vunpack.c.l.b16 %v2042
    %v2247 = vunpack.c.h.b16 %v2042
    %v2248 = vunpack.c.l.b16 %v2043
    %v2249 = vunpack.c.l.b16 %v2044
    %v2250 = vunpack.c.h.b16 %v2044
    %v2251 = vunpack.c.l.b16 %v2045
    %v2252 = vunpack.c.l.b16 %v2046
    %v2253 = vunpack.c.h.b16 %v2046
    %v2254 = vunpack.c.l.b16 %v2047
    %v2255 = vunpack.c.l.b16 %v2048
    %v2256 = vunpack.c.h.b16 %v2048
    %v2257 = vunpack.c.l.b16 %v2049
    %v2258 = vunpack.c.l.b16 %v2050
    %v2259 = vunpack.c.h.b16 %v2050
    %v2260 = vunpack.c.l.b16 %v2051
    %v2261 = vunpack.c.l.b16 %v2052
    %v2262 = vunpack.c.h.b16 %v2052
    %v2263 = vunpack.c.l.b16 %v2053
    %v2264 = vunpack.c.l.b16 %v2054
    %v2265 = vunpack.c.h.b16 %v2054
    %v2266 = vunpack.c.l.b16 %v2055
    %v2267 = vunpack.c.l.b16 %v2056
    %v2268 = vunpack.c.h.b16 %v2056
    %v2269 = vunpack.c.l.b16 %v2057
    %v2270 = vunpack.c.l.b16 %v2058
    %v2271 = vunpack.c.h.b16 %v2058
    %v2272 = vunpack.c.l.b16 %v2059
    %v2273 = vunpack.c.l.b16 %v2060
    %v2274 = vunpack.c.h.b16 %v2060
    %v2275 = vunpack.c.l.b16 %v2061
    %v2276 = vunpack.c.l.b16 %v2062
    %v2277 = vunpack.c.h.b16 %v2062
    %v2278 = vunpack.c.l.b16 %v2063
    %v2279 = vunpack.c.l.b16 %v2064
    %v2280 = vunpack.c.h.b16 %v2064
    %v2281 = vunpack.c.l.b16 %v2065
    %v2282 = vunpack.c.l.b16 %v2066
    %v2283 = vunpack.c.h.b16 %v2066
    %v2284 = vunpack.c.l.b16 %v2067
    %v2285 = vunpack.c.l.b16 %v2068
    %v2286 = vunpack.c.h.b16 %v2068
    %v2287 = vunpack.c.l.b16 %v2069
    %v2288 = vunpack.c.l.b16 %v2070
    %v2289 = vunpack.c.h.b16 %v2070
    %v2290 = vunpack.c.l.b16 %v2071
    %v2291 = vunpack.c.l.b16 %v2072
    %v2292 = vunpack.c.h.b16 %v2072
    %v2293 = vunpack.c.l.b16 %v2073
    %v2294 = vunpack.c.l.b16 %v2074
    %v2295 = vunpack.c.h.b16 %v2074
    %v2296 = vunpack.c.l.b16 %v2075
    %v2297 = vunpack.c.l.b16 %v2076
    %v2298 = vunpack.c.h.b16 %v2076
    %v2299 = vunpack.c.l.b16 %v2077
    %v2300 = vunpack.c.l.b16 %v2078
    %v2301 = vunpack.c.h.b16 %v2078
    %v2302 = vunpack.c.l.b16 %v2079
    %v2303 = vunpack.c.l.b16 %v2080
    %v2304 = vunpack.c.h.b16 %v2080
    %v2305 = vunpack.c.l.b16 %v2081
    %v2306 = vunpack.c.l.b16 %v2082
    %v2307 = vunpack.c.h.b16 %v2082
    %v2308 = vunpack.c.l.b16 %v2083
    %v2309 = vunpack.c.l.b16 %v2084
    %v2310 = vunpack.c.h.b16 %v2084
    %v2311 = vunpack.c.l.b16 %v2085
    %v2312 = vunpack.c.l.b16 %v2086
    %v2313 = vunpack.c.h.b16 %v2086
    %v2314 = vunpack.c.l.b16 %v2087
    %v2315 = vunpack.c.l.b16 %v2088
    %v2316 = vunpack.c.h.b16 %v2088
    %v2317 = vunpack.c.l.b16 %v2089
    %v2318 = vunpack.c.l.b16 %v2090
    %v2319 = vunpack.c.h.b16 %v2090
    %v2320 = vunpack.c.l.b16 %v2091
    %v2321 = vunpack.c.l.b16 %v2092
    %v2322 = vunpack.c.h.b16 %v2092
    %v2323 = vunpack.c.l.b16 %v2093
    %v2324 = vunpack.c.l.b16 %v2094
    %v2325 = vunpack.c.h.b16 %v2094
    %v2326 = vunpack.c.l.b16 %v2095
    %v2327 = vunpack.c.l.b16 %v2096
    %v2328 = vunpack.c.h.b16 %v2096
    %v2329 = vunpack.c.l.b16 %v2097
    %v2330 = vunpack.c.l.b16 %v2098
    %v2331 = vunpack.c.h.b16 %v2098
    %v2332 = vunpack.c.l.b16 %v2099
    %v2333 = vunpack.c.l.b16 %v2100
    %v2334 = vunpack.c.h.b16 %v2100
    %v2335 = vunpack.c.l.b16 %v2101
    %v2336 = vunpack.c.l.b16 %v2102
    %v2337 = vunpack.c.h.b16 %v2102
    %v2338 = vunpack.c.l.b16 %v2103
    %v2339 = vunpack.c.l.b16 %v2104
    %v2340 = vunpack.c.h.b16 %v2104
    %v2341 = vunpack.c.l.b16 %v2105
    %v2342 = vunpack.c.l.b16 %v2106
    %v2343 = vunpack.c.h.b16 %v2106
    %v2344 = vunpack.c.l.b16 %v2107
    %v2345 = vunpack.c.l.b16 %v2108
    %v2346 = vunpack.c.h.b16 %v2108
    %v2347 = vunpack.c.l.b16 %v2109
    %v2348 = vunpack.c.l.b16 %v2110
    %v2349 = vunpack.c.h.b16 %v2110
    %v2350 = vunpack.c.l.b16 %v2111
    %v2351 = vunpack.c.l.b16 %v2112
    %v2352 = vunpack.c.h.b16 %v2112
    %v2353 = vunpack.c.l.b16 %v2113
    %v2354 = vunpack.c.l.b16 %v2114
    %v2355 = vunpack.c.h.b16 %v2114
    %v2356 = vunpack.c.l.b16 %v2115
    %v2357 = vunpack.c.l.b16 %v2116
    %v2358 = vunpack.c.h.b16 %v2116
    %v2359 = vunpack.c.l.b16 %v2117
    %v2360 = vunpack.c.l.b16 %v2118
    %v2361 = vunpack.c.h.b16 %v2118
    %v2362 = vunpack.c.l.b16 %v2119
    %v2363 = vunpack.c.l.b16 %v2120
    %v2364 = vunpack.c.h.b16 %v2120
    %v2365 = vunpack.c.l.b16 %v2121
    %v2366 = vunpack.c.l.b16 %v2122
    %v2367 = vunpack.c.h.b16 %v2122
    %v2368 = vunpack.c.l.b16 %v2123
    %v2369 = vunpack.c.l.b16 %v2124
    %v2370 = vunpack.c.h.b16 %v2124
    %v2371 = vunpack.c.l.b16 %v2125
    %v2372 = vunpack.c.l.b16 %v2126
    %v2373 = vunpack.c.h.b16 %v2126
    %v2374 = vunpack.c.l.b16 %v2127
    %v2375 = vunpack.c.l.b16 %v2128
    %v2376 = vunpack.c.h.b16 %v2128
    %v2377 = vunpack.c.l.b16 %v2129
    %v2378 = vpack.c.b16 %v2237, %v2234
    %v2379 = vpack.c.b16 %v2238, %v2235
    %v2380 = vpack.c.b16 %v2239, %v2236
    %v2381 = vpack.c.b16 %v2243, %v2240
    %v2382 = vpack.c.b16 %v2244, %v2241
    %v2383 = vpack.c.b16 %v2245, %v2242
    %v2384 = vpack.c.b16 %v2249, %v2246
    %v2385 = vpack.c.b16 %v2250, %v2247
    %v2386 = vpack.c.b16 %v2251, %v2248
    %v2387 = vpack.c.b16 %v2255, %v2252
    %v2388 = vpack.c.b16 %v2256, %v2253
    %v2389 = vpack.c.b16 %v2257, %v2254
    %v2390 = vpack.c.b16 %v2261, %v2258
    %v2391 = vpack.c.b16 %v2262, %v2259
    %v2392 = vpack.c.b16 %v2263, %v2260
    %v2393 = vpack.c.b16 %v2267, %v2264
    %v2394 = vpack.c.b16 %v2268, %v2265
    %v2395 = vpack.c.b16 %v2269, %v2266
    %v2396 = vpack.c.b16 %v2273, %v2270
    %v2397 = vpack.c.b16 %v2274, %v2271
    %v2398 = vpack.c.b16 %v2275, %v2272
    %v2399 = vpack.c.b16 %v2279, %v2276
    %v2400 = vpack.c.b16 %v2280, %v2277
    %v2401 = vpack.c.b16 %v2281, %v2278
    %v2402 = vpack.c.b16 %v2285, %v2282
    %v2403 = vpack.c.b16 %v2286, %v2283
    %v2404 = vpack.c.b16 %v2287, %v2284
    %v2405 = vpack.c.b16 %v2291, %v2288
    %v2406 = vpack.c.b16 %v2292, %v2289
    %v2407 = vpack.c.b16 %v2293, %v2290
    %v2408 = vpack.c.b16 %v2297, %v2294
    %v2409 = vpack.c.b16 %v2298, %v2295
    %v2410 = vpack.c.b16 %v2299, %v2296
    %v2411 = vpack.c.b16 %v2303, %v2300
    %v2412 = vpack.c.b16 %v2304, %v2301
    %v2413 = vpack.c.b16 %v2305, %v2302
    %v2414 = vpack.c.b16 %v2309, %v2306
    %v2415 = vpack.c.b16 %v2310, %v2307
    %v2416 = vpack.c.b16 %v2311, %v2308
    %v2417 = vpack.c.b16 %v2315, %v2312
    %v2418 = vpack.c.b16 %v2316, %v2313
    %v2419 = vpack.c.b16 %v2317, %v2314
    %v2420 = vpack.c.b16 %v2321, %v2318
    %v2421 = vpack.c.b16 %v2322, %v2319
    %v2422 = vpack.c.b16 %v2323, %v2320
    %v2423 = vpack.c.b16 %v2327, %v2324
    %v2424 = vpack.c.b16 %v2328, %v2325
    %v2425 = vpack.c.b16 %v2329, %v2326
    %v2426 = vpack.c.b16 %v2333, %v2330
    %v2427 = vpack.c.b16 %v2334, %v2331
    %v2428 = vpack.c.b16 %v2335, %v2332
    %v2429 = vpack.c.b16 %v2339, %v2336
    %v2430 = vpack.c.b16 %v2340, %v2337
    %v2431 = vpack.c.b16 %v2341, %v2338
    %v2432 = vpack.c.b16 %v2345, %v2342
    %v2433 = vpack.c.b16 %v2346, %v2343
    %v2434 = vpack.c.b16 %v2347, %v2344
    %v2435 = vpack.c.b16 %v2351, %v2348
    %v2436 = vpack.c.b16 %v2352, %v2349
    %v2437 = vpack.c.b16 %v2353, %v2350
    %v2438 = vpack.c.b16 %v2357, %v2354
    %v2439 = vpack.c.b16 %v2358, %v2355
    %v2440 = vpack.c.b16 %v2359, %v2356
    %v2441 = vpack.c.b16 %v2363, %v2360
    %v2442 = vpack.c.b16 %v2364, %v2361
    %v2443 = vpack.c.b16 %v2365, %v2362
    %v2444 = vpack.c.b16 %v2369, %v2366
    %v2445 = vpack.c.b16 %v2370, %v2367
    %v2446 = vpack.c.b16 %v2371, %v2368
    %v2447 = vpack.c.b16 %v2375, %v2372
    %v2448 = vpack.c.b16 %v2376, %v2373
    %v2449 = vpack.c.b16 %v2377, %v2374
    %2522 = vmatpush.bf16.msra.mxu0 %v2399
    %2523 = vmatpush.bf16.msra.mxu0 %v2396
    %2524 = vmatpush.bf16.msra.mxu0 %v2393
    %2525 = vmatpush.bf16.msra.mxu0 %v2390
    %2526 = vmatpush.bf16.msra.mxu0 %v2387
    %2527 = vmatpush.bf16.msra.mxu0 %v2384
    %2528 = vmatpush.bf16.msra.mxu0 %v2381
    %2529 = vmatpush.bf16.msra.mxu0 %v2378
    %2530 = vmatmul.bf16.gmra.mxu0 %v2031
    %v2531 = vpop.f32.mrf.mxu0
    %v2532 = vadd.f32 %v2132, %v2531
    %v2533 = vpop.f32.mrf.mxu0
    %2534 = vdwg.mxu0
    %2535 = vmatpush.bf16.msra.mxu0 %v2423
    %2536 = vmatpush.bf16.msra.mxu0 %v2420
    %2537 = vmatpush.bf16.msra.mxu0 %v2417
    %2538 = vmatpush.bf16.msra.mxu0 %v2414
    %2539 = vmatpush.bf16.msra.mxu0 %v2411
    %2540 = vmatpush.bf16.msra.mxu0 %v2408
    %2541 = vmatpush.bf16.msra.mxu0 %v2405
    %2542 = vmatpush.bf16.msra.mxu0 %v2402
    %2543 = vmatmul.bf16.gmra.mxu0 %v2032
    %v2544 = vpop.f32.mrf.mxu0
    %v2545 = vadd.f32 %v2532, %v2544
    %v2546 = vpop.f32.mrf.mxu0
    %2547 = vdwg.mxu0
    %2548 = vmatpush.bf16.msra.mxu0 %v2447
    %2549 = vmatpush.bf16.msra.mxu0 %v2444
    %2550 = vmatpush.bf16.msra.mxu0 %v2441
    %2551 = vmatpush.bf16.msra.mxu0 %v2438
    %2552 = vmatpush.bf16.msra.mxu0 %v2435
    %2553 = vmatpush.bf16.msra.mxu0 %v2432
    %2554 = vmatpush.bf16.msra.mxu0 %v2429
    %2555 = vmatpush.bf16.msra.mxu0 %v2426
    %2556 = vmatmul.bf16.gmra.mxu0 %v2033
    %v2557 = vpop.f32.mrf.mxu0
    %v2558 = vadd.f32 %v2545, %v2557
    %v2559 = vpop.f32.mrf.mxu0
    %2560 = vdwg.mxu0
    %2561 = vmatpush.bf16.msra.mxu0 %v2400
    %2562 = vmatpush.bf16.msra.mxu0 %v2397
    %2563 = vmatpush.bf16.msra.mxu0 %v2394
    %2564 = vmatpush.bf16.msra.mxu0 %v2391
    %2565 = vmatpush.bf16.msra.mxu0 %v2388
    %2566 = vmatpush.bf16.msra.mxu0 %v2385
    %2567 = vmatpush.bf16.msra.mxu0 %v2382
    %2568 = vmatpush.bf16.msra.mxu0 %v2379
    %2569 = vmatmul.bf16.gmra.mxu0 %v2031
    %v2570 = vpop.f32.mrf.mxu0
    %v2571 = vadd.f32 %v2133, %v2570
    %v2572 = vpop.f32.mrf.mxu0
    %2573 = vdwg.mxu0
    %2574 = vmatpush.bf16.msra.mxu0 %v2424
    %2575 = vmatpush.bf16.msra.mxu0 %v2421
    %2576 = vmatpush.bf16.msra.mxu0 %v2418
    %2577 = vmatpush.bf16.msra.mxu0 %v2415
    %2578 = vmatpush.bf16.msra.mxu0 %v2412
    %2579 = vmatpush.bf16.msra.mxu0 %v2409
    %2580 = vmatpush.bf16.msra.mxu0 %v2406
    %2581 = vmatpush.bf16.msra.mxu0 %v2403
    %2582 = vmatmul.bf16.gmra.mxu0 %v2032
    %v2583 = vpop.f32.mrf.mxu0
    %v2584 = vadd.f32 %v2571, %v2583
    %v2585 = vpop.f32.mrf.mxu0
    %2586 = vdwg.mxu0
    %2587 = vmatpush.bf16.msra.mxu0 %v2448
    %2588 = vmatpush.bf16.msra.mxu0 %v2445
    %2589 = vmatpush.bf16.msra.mxu0 %v2442
    %2590 = vmatpush.bf16.msra.mxu0 %v2439
    %2591 = vmatpush.bf16.msra.mxu0 %v2436
    %2592 = vmatpush.bf16.msra.mxu0 %v2433
    %2593 = vmatpush.bf16.msra.mxu0 %v2430
    %2594 = vmatpush.bf16.msra.mxu0 %v2427
    %2595 = vmatmul.bf16.gmra.mxu0 %v2033
    %v2596 = vpop.f32.mrf.mxu0
    %v2597 = vadd.f32 %v2584, %v2596
    %v2598 = vpop.f32.mrf.mxu0
    %2599 = vdwg.mxu0
    %2600 = vmatpush.bf16.msra.mxu0 %v2401
    %2601 = vmatpush.bf16.msra.mxu0 %v2398
    %2602 = vmatpush.bf16.msra.mxu0 %v2395
    %2603 = vmatpush.bf16.msra.mxu0 %v2392
    %2604 = vmatpush.bf16.msra.mxu0 %v2389
    %2605 = vmatpush.bf16.msra.mxu0 %v2386
    %2606 = vmatpush.bf16.msra.mxu0 %v2383
    %2607 = vmatpush.bf16.msra.mxu0 %v2380
    %2608 = vmatmul.bf16.gmra.mxu0 %v2031
    %v2609 = vpop.f32.mrf.mxu0
    %v2610 = vadd.f32 %v2134, %v2609
    %v2611 = vpop.f32.mrf.mxu0
    %2612 = vdwg.mxu0
    %2613 = vmatpush.bf16.msra.mxu0 %v2425
    %2614 = vmatpush.bf16.msra.mxu0 %v2422
    %2615 = vmatpush.bf16.msra.mxu0 %v2419
    %2616 = vmatpush.bf16.msra.mxu0 %v2416
    %2617 = vmatpush.bf16.msra.mxu0 %v2413
    %2618 = vmatpush.bf16.msra.mxu0 %v2410
    %2619 = vmatpush.bf16.msra.mxu0 %v2407
    %2620 = vmatpush.bf16.msra.mxu0 %v2404
    %2621 = vmatmul.bf16.gmra.mxu0 %v2032
    %v2622 = vpop.f32.mrf.mxu0
    %v2623 = vadd.f32 %v2610, %v2622
    %v2624 = vpop.f32.mrf.mxu0
    %2625 = vdwg.mxu0
    %2626 = vmatpush.bf16.msra.mxu0 %v2449
    %2627 = vmatpush.bf16.msra.mxu0 %v2446
    %2628 = vmatpush.bf16.msra.mxu0 %v2443
    %2629 = vmatpush.bf16.msra.mxu0 %v2440
    %2630 = vmatpush.bf16.msra.mxu0 %v2437
    %2631 = vmatpush.bf16.msra.mxu0 %v2434
    %2632 = vmatpush.bf16.msra.mxu0 %v2431
    %2633 = vmatpush.bf16.msra.mxu0 %v2428
    %2634 = vmatmul.bf16.gmra.mxu0 %v2033
    %v2635 = vpop.f32.mrf.mxu0
    %v2636 = vadd.f32 %v2623, %v2635
    %v2637 = vpop.f32.mrf.mxu0
    %2638 = vdwg.mxu0
    %v2639 = vmul.f32 %v2558, 0.01
    %v2640 = vmul.f32 %v2597, 0.01
    %v2641 = vmul.f32 %v2636, 0.01
    %v2642 = vmax.f32 %v2558, %v2639
    %v2643 = vmax.f32 %v2597, %v2640
    %v2644 = vmax.f32 %v2636, %v2641
    %v2645 = vpack.c.bf16 %v2642, %v2642
    %v2646 = vpack.c.bf16 %v2643, %v2643
    %v2647 = vpack.c.bf16 %v2644, %v2644
    %v2648 = vld [vmem:[#allocation14] sm:$0xff]
    %v2649 = vld [vmem:[#allocation14 + $0x8] sm:$0xf]
    %v2650 = vld [vmem:[#allocation14 + $0xc] sm:$0xff]
    %v2651 = vld [vmem:[#allocation14 + $0x14] sm:$0xf]
    %v2652 = vld [vmem:[#allocation14 + $0x18] sm:$0xff]
    %v2653 = vld [vmem:[#allocation14 + $0x20] sm:$0xf]
    %v2654 = vld [vmem:[#allocation14 + $0x24] sm:$0xff]
    %v2655 = vld [vmem:[#allocation14 + $0x2c] sm:$0xf]
    %v2656 = vld [vmem:[#allocation14 + $0x30] sm:$0xff]
    %v2657 = vld [vmem:[#allocation14 + $0x38] sm:$0xf]
    %v2658 = vld [vmem:[#allocation14 + $0x3c] sm:$0xff]
    %v2659 = vld [vmem:[#allocation14 + $0x44] sm:$0xf]
    %v2660 = vld [vmem:[#allocation14 + $0x48] sm:$0xff]
    %v2661 = vld [vmem:[#allocation14 + $0x50] sm:$0xf]
    %v2662 = vld [vmem:[#allocation14 + $0x54] sm:$0xff]
    %v2663 = vld [vmem:[#allocation14 + $0x5c] sm:$0xf]
    %v2664 = vld [vmem:[#allocation14 + $0x60] sm:$0xff]
    %v2665 = vld [vmem:[#allocation14 + $0x68] sm:$0xf]
    %v2666 = vld [vmem:[#allocation14 + $0x6c] sm:$0xff]
    %v2667 = vld [vmem:[#allocation14 + $0x74] sm:$0xf]
    %v2668 = vld [vmem:[#allocation14 + $0x78] sm:$0xff]
    %v2669 = vld [vmem:[#allocation14 + $0x80] sm:$0xf]
    %v2670 = vld [vmem:[#allocation14 + $0x84] sm:$0xff]
    %v2671 = vld [vmem:[#allocation14 + $0x8c] sm:$0xf]
    %v2672 = vld [vmem:[#allocation14 + $0x90] sm:$0xff]
    %v2673 = vld [vmem:[#allocation14 + $0x98] sm:$0xf]
    %v2674 = vld [vmem:[#allocation14 + $0x9c] sm:$0xff]
    %v2675 = vld [vmem:[#allocation14 + $0xa4] sm:$0xf]
    %v2676 = vld [vmem:[#allocation14 + $0xa8] sm:$0xff]
    %v2677 = vld [vmem:[#allocation14 + $0xb0] sm:$0xf]
    %v2678 = vld [vmem:[#allocation14 + $0xb4] sm:$0xff]
    %v2679 = vld [vmem:[#allocation14 + $0xbc] sm:$0xf]
    %v2680 = vld [vmem:[#allocation14 + $0xc0] sm:$0xff]
    %v2681 = vld [vmem:[#allocation14 + $0xc8] sm:$0xf]
    %v2682 = vld [vmem:[#allocation14 + $0xcc] sm:$0xff]
    %v2683 = vld [vmem:[#allocation14 + $0xd4] sm:$0xf]
    %v2684 = vld [vmem:[#allocation14 + $0xd8] sm:$0xff]
    %v2685 = vld [vmem:[#allocation14 + $0xe0] sm:$0xf]
    %v2686 = vld [vmem:[#allocation14 + $0xe4] sm:$0xff]
    %v2687 = vld [vmem:[#allocation14 + $0xec] sm:$0xf]
    %v2688 = vld [vmem:[#allocation14 + $0xf0] sm:$0xff]
    %v2689 = vld [vmem:[#allocation14 + $0xf8] sm:$0xf]
    %v2690 = vld [vmem:[#allocation14 + $0xfc] sm:$0xff]
    %v2691 = vld [vmem:[#allocation14 + $0x104] sm:$0xf]
    %v2692 = vld [vmem:[#allocation14 + $0x108] sm:$0xff]
    %v2693 = vld [vmem:[#allocation14 + $0x110] sm:$0xf]
    %v2694 = vld [vmem:[#allocation14 + $0x114] sm:$0xff]
    %v2695 = vld [vmem:[#allocation14 + $0x11c] sm:$0xf]
    %v2696 = vld [vmem:[#allocation14 + $0x120] sm:$0xff]
    %v2697 = vld [vmem:[#allocation14 + $0x128] sm:$0xf]
    %v2698 = vld [vmem:[#allocation14 + $0x12c] sm:$0xff]
    %v2699 = vld [vmem:[#allocation14 + $0x134] sm:$0xf]
    %v2700 = vld [vmem:[#allocation14 + $0x138] sm:$0xff]
    %v2701 = vld [vmem:[#allocation14 + $0x140] sm:$0xf]
    %v2702 = vld [vmem:[#allocation14 + $0x144] sm:$0xff]
    %v2703 = vld [vmem:[#allocation14 + $0x14c] sm:$0xf]
    %v2704 = vld [vmem:[#allocation14 + $0x150] sm:$0xff]
    %v2705 = vld [vmem:[#allocation14 + $0x158] sm:$0xf]
    %v2706 = vld [vmem:[#allocation14 + $0x15c] sm:$0xff]
    %v2707 = vld [vmem:[#allocation14 + $0x164] sm:$0xf]
    %v2708 = vld [vmem:[#allocation14 + $0x168] sm:$0xff]
    %v2709 = vld [vmem:[#allocation14 + $0x170] sm:$0xf]
    %v2710 = vld [vmem:[#allocation14 + $0x174] sm:$0xff]
    %v2711 = vld [vmem:[#allocation14 + $0x17c] sm:$0xf]
    %v2712 = vld [vmem:[#allocation14 + $0x180] sm:$0xff]
    %v2713 = vld [vmem:[#allocation14 + $0x188] sm:$0xf]
    %v2714 = vld [vmem:[#allocation14 + $0x18c] sm:$0xff]
    %v2715 = vld [vmem:[#allocation14 + $0x194] sm:$0xf]
    %v2716 = vld [vmem:[#allocation14 + $0x198] sm:$0xff]
    %v2717 = vld [vmem:[#allocation14 + $0x1a0] sm:$0xf]
    %v2718 = vld [vmem:[#allocation14 + $0x1a4] sm:$0xff]
    %v2719 = vld [vmem:[#allocation14 + $0x1ac] sm:$0xf]
    %v2720 = vld [vmem:[#allocation14 + $0x1b0] sm:$0xff]
    %v2721 = vld [vmem:[#allocation14 + $0x1b8] sm:$0xf]
    %v2722 = vld [vmem:[#allocation14 + $0x1bc] sm:$0xff]
    %v2723 = vld [vmem:[#allocation14 + $0x1c4] sm:$0xf]
    %v2724 = vld [vmem:[#allocation14 + $0x1c8] sm:$0xff]
    %v2725 = vld [vmem:[#allocation14 + $0x1d0] sm:$0xf]
    %v2726 = vld [vmem:[#allocation14 + $0x1d4] sm:$0xff]
    %v2727 = vld [vmem:[#allocation14 + $0x1dc] sm:$0xf]
    %v2728 = vld [vmem:[#allocation14 + $0x1e0] sm:$0xff]
    %v2729 = vld [vmem:[#allocation14 + $0x1e8] sm:$0xf]
    %v2730 = vld [vmem:[#allocation14 + $0x1ec] sm:$0xff]
    %v2731 = vld [vmem:[#allocation14 + $0x1f4] sm:$0xf]
    %v2732 = vld [vmem:[#allocation14 + $0x1f8] sm:$0xff]
    %v2733 = vld [vmem:[#allocation14 + $0x200] sm:$0xf]
    %v2734 = vld [vmem:[#allocation14 + $0x204] sm:$0xff]
    %v2735 = vld [vmem:[#allocation14 + $0x20c] sm:$0xf]
    %v2736 = vld [vmem:[#allocation14 + $0x210] sm:$0xff]
    %v2737 = vld [vmem:[#allocation14 + $0x218] sm:$0xf]
    %v2738 = vld [vmem:[#allocation14 + $0x21c] sm:$0xff]
    %v2739 = vld [vmem:[#allocation14 + $0x224] sm:$0xf]
    %v2740 = vld [vmem:[#allocation14 + $0x228] sm:$0xff]
    %v2741 = vld [vmem:[#allocation14 + $0x230] sm:$0xf]
    %v2742 = vld [vmem:[#allocation14 + $0x234] sm:$0xff]
    %v2743 = vld [vmem:[#allocation14 + $0x23c] sm:$0xf]
    %v2744 = vld [vmem:[%s10] sm:$0x7]
    %v2746 = vperm.slane %v2744, 0
    %v2747 = vperm.slane %v2744, 1
    %v2748 = vperm.slane %v2744, 2
    %v2848 = vunpack.c.l.b16 %v2648
    %v2849 = vunpack.c.h.b16 %v2648
    %v2850 = vunpack.c.l.b16 %v2649
    %v2851 = vunpack.c.l.b16 %v2650
    %v2852 = vunpack.c.h.b16 %v2650
    %v2853 = vunpack.c.l.b16 %v2651
    %v2854 = vunpack.c.l.b16 %v2652
    %v2855 = vunpack.c.h.b16 %v2652
    %v2856 = vunpack.c.l.b16 %v2653
    %v2857 = vunpack.c.l.b16 %v2654
    %v2858 = vunpack.c.h.b16 %v2654
    %v2859 = vunpack.c.l.b16 %v2655
    %v2860 = vunpack.c.l.b16 %v2656
    %v2861 = vunpack.c.h.b16 %v2656
    %v2862 = vunpack.c.l.b16 %v2657
    %v2863 = vunpack.c.l.b16 %v2658
    %v2864 = vunpack.c.h.b16 %v2658
    %v2865 = vunpack.c.l.b16 %v2659
    %v2866 = vunpack.c.l.b16 %v2660
    %v2867 = vunpack.c.h.b16 %v2660
    %v2868 = vunpack.c.l.b16 %v2661
    %v2869 = vunpack.c.l.b16 %v2662
    %v2870 = vunpack.c.h.b16 %v2662
    %v2871 = vunpack.c.l.b16 %v2663
    %v2872 = vunpack.c.l.b16 %v2664
    %v2873 = vunpack.c.h.b16 %v2664
    %v2874 = vunpack.c.l.b16 %v2665
    %v2875 = vunpack.c.l.b16 %v2666
    %v2876 = vunpack.c.h.b16 %v2666
    %v2877 = vunpack.c.l.b16 %v2667
    %v2878 = vunpack.c.l.b16 %v2668
    %v2879 = vunpack.c.h.b16 %v2668
    %v2880 = vunpack.c.l.b16 %v2669
    %v2881 = vunpack.c.l.b16 %v2670
    %v2882 = vunpack.c.h.b16 %v2670
    %v2883 = vunpack.c.l.b16 %v2671
    %v2884 = vunpack.c.l.b16 %v2672
    %v2885 = vunpack.c.h.b16 %v2672
    %v2886 = vunpack.c.l.b16 %v2673
    %v2887 = vunpack.c.l.b16 %v2674
    %v2888 = vunpack.c.h.b16 %v2674
    %v2889 = vunpack.c.l.b16 %v2675
    %v2890 = vunpack.c.l.b16 %v2676
    %v2891 = vunpack.c.h.b16 %v2676
    %v2892 = vunpack.c.l.b16 %v2677
    %v2893 = vunpack.c.l.b16 %v2678
    %v2894 = vunpack.c.h.b16 %v2678
    %v2895 = vunpack.c.l.b16 %v2679
    %v2896 = vunpack.c.l.b16 %v2680
    %v2897 = vunpack.c.h.b16 %v2680
    %v2898 = vunpack.c.l.b16 %v2681
    %v2899 = vunpack.c.l.b16 %v2682
    %v2900 = vunpack.c.h.b16 %v2682
    %v2901 = vunpack.c.l.b16 %v2683
    %v2902 = vunpack.c.l.b16 %v2684
    %v2903 = vunpack.c.h.b16 %v2684
    %v2904 = vunpack.c.l.b16 %v2685
    %v2905 = vunpack.c.l.b16 %v2686
    %v2906 = vunpack.c.h.b16 %v2686
    %v2907 = vunpack.c.l.b16 %v2687
    %v2908 = vunpack.c.l.b16 %v2688
    %v2909 = vunpack.c.h.b16 %v2688
    %v2910 = vunpack.c.l.b16 %v2689
    %v2911 = vunpack.c.l.b16 %v2690
    %v2912 = vunpack.c.h.b16 %v2690
    %v2913 = vunpack.c.l.b16 %v2691
    %v2914 = vunpack.c.l.b16 %v2692
    %v2915 = vunpack.c.h.b16 %v2692
    %v2916 = vunpack.c.l.b16 %v2693
    %v2917 = vunpack.c.l.b16 %v2694
    %v2918 = vunpack.c.h.b16 %v2694
    %v2919 = vunpack.c.l.b16 %v2695
    %v2920 = vunpack.c.l.b16 %v2696
    %v2921 = vunpack.c.h.b16 %v2696
    %v2922 = vunpack.c.l.b16 %v2697
    %v2923 = vunpack.c.l.b16 %v2698
    %v2924 = vunpack.c.h.b16 %v2698
    %v2925 = vunpack.c.l.b16 %v2699
    %v2926 = vunpack.c.l.b16 %v2700
    %v2927 = vunpack.c.h.b16 %v2700
    %v2928 = vunpack.c.l.b16 %v2701
    %v2929 = vunpack.c.l.b16 %v2702
    %v2930 = vunpack.c.h.b16 %v2702
    %v2931 = vunpack.c.l.b16 %v2703
    %v2932 = vunpack.c.l.b16 %v2704
    %v2933 = vunpack.c.h.b16 %v2704
    %v2934 = vunpack.c.l.b16 %v2705
    %v2935 = vunpack.c.l.b16 %v2706
    %v2936 = vunpack.c.h.b16 %v2706
    %v2937 = vunpack.c.l.b16 %v2707
    %v2938 = vunpack.c.l.b16 %v2708
    %v2939 = vunpack.c.h.b16 %v2708
    %v2940 = vunpack.c.l.b16 %v2709
    %v2941 = vunpack.c.l.b16 %v2710
    %v2942 = vunpack.c.h.b16 %v2710
    %v2943 = vunpack.c.l.b16 %v2711
    %v2944 = vunpack.c.l.b16 %v2712
    %v2945 = vunpack.c.h.b16 %v2712
    %v2946 = vunpack.c.l.b16 %v2713
    %v2947 = vunpack.c.l.b16 %v2714
    %v2948 = vunpack.c.h.b16 %v2714
    %v2949 = vunpack.c.l.b16 %v2715
    %v2950 = vunpack.c.l.b16 %v2716
    %v2951 = vunpack.c.h.b16 %v2716
    %v2952 = vunpack.c.l.b16 %v2717
    %v2953 = vunpack.c.l.b16 %v2718
    %v2954 = vunpack.c.h.b16 %v2718
    %v2955 = vunpack.c.l.b16 %v2719
    %v2956 = vunpack.c.l.b16 %v2720
    %v2957 = vunpack.c.h.b16 %v2720
    %v2958 = vunpack.c.l.b16 %v2721
    %v2959 = vunpack.c.l.b16 %v2722
    %v2960 = vunpack.c.h.b16 %v2722
    %v2961 = vunpack.c.l.b16 %v2723
    %v2962 = vunpack.c.l.b16 %v2724
    %v2963 = vunpack.c.h.b16 %v2724
    %v2964 = vunpack.c.l.b16 %v2725
    %v2965 = vunpack.c.l.b16 %v2726
    %v2966 = vunpack.c.h.b16 %v2726
    %v2967 = vunpack.c.l.b16 %v2727
    %v2968 = vunpack.c.l.b16 %v2728
    %v2969 = vunpack.c.h.b16 %v2728
    %v2970 = vunpack.c.l.b16 %v2729
    %v2971 = vunpack.c.l.b16 %v2730
    %v2972 = vunpack.c.h.b16 %v2730
    %v2973 = vunpack.c.l.b16 %v2731
    %v2974 = vunpack.c.l.b16 %v2732
    %v2975 = vunpack.c.h.b16 %v2732
    %v2976 = vunpack.c.l.b16 %v2733
    %v2977 = vunpack.c.l.b16 %v2734
    %v2978 = vunpack.c.h.b16 %v2734
    %v2979 = vunpack.c.l.b16 %v2735
    %v2980 = vunpack.c.l.b16 %v2736
    %v2981 = vunpack.c.h.b16 %v2736
    %v2982 = vunpack.c.l.b16 %v2737
    %v2983 = vunpack.c.l.b16 %v2738
    %v2984 = vunpack.c.h.b16 %v2738
    %v2985 = vunpack.c.l.b16 %v2739
    %v2986 = vunpack.c.l.b16 %v2740
    %v2987 = vunpack.c.h.b16 %v2740
    %v2988 = vunpack.c.l.b16 %v2741
    %v2989 = vunpack.c.l.b16 %v2742
    %v2990 = vunpack.c.h.b16 %v2742
    %v2991 = vunpack.c.l.b16 %v2743
    %v2992 = vpack.c.b16 %v2851, %v2848
    %v2993 = vpack.c.b16 %v2852, %v2849
    %v2994 = vpack.c.b16 %v2853, %v2850
    %v2995 = vpack.c.b16 %v2857, %v2854
    %v2996 = vpack.c.b16 %v2858, %v2855
    %v2997 = vpack.c.b16 %v2859, %v2856
    %v2998 = vpack.c.b16 %v2863, %v2860
    %v2999 = vpack.c.b16 %v2864, %v2861
    %v3000 = vpack.c.b16 %v2865, %v2862
    %v3001 = vpack.c.b16 %v2869, %v2866
    %v3002 = vpack.c.b16 %v2870, %v2867
    %v3003 = vpack.c.b16 %v2871, %v2868
    %v3004 = vpack.c.b16 %v2875, %v2872
    %v3005 = vpack.c.b16 %v2876, %v2873
    %v3006 = vpack.c.b16 %v2877, %v2874
    %v3007 = vpack.c.b16 %v2881, %v2878
    %v3008 = vpack.c.b16 %v2882, %v2879
    %v3009 = vpack.c.b16 %v2883, %v2880
    %v3010 = vpack.c.b16 %v2887, %v2884
    %v3011 = vpack.c.b16 %v2888, %v2885
    %v3012 = vpack.c.b16 %v2889, %v2886
    %v3013 = vpack.c.b16 %v2893, %v2890
    %v3014 = vpack.c.b16 %v2894, %v2891
    %v3015 = vpack.c.b16 %v2895, %v2892
    %v3016 = vpack.c.b16 %v2899, %v2896
    %v3017 = vpack.c.b16 %v2900, %v2897
    %v3018 = vpack.c.b16 %v2901, %v2898
    %v3019 = vpack.c.b16 %v2905, %v2902
    %v3020 = vpack.c.b16 %v2906, %v2903
    %v3021 = vpack.c.b16 %v2907, %v2904
    %v3022 = vpack.c.b16 %v2911, %v2908
    %v3023 = vpack.c.b16 %v2912, %v2909
    %v3024 = vpack.c.b16 %v2913, %v2910
    %v3025 = vpack.c.b16 %v2917, %v2914
    %v3026 = vpack.c.b16 %v2918, %v2915
    %v3027 = vpack.c.b16 %v2919, %v2916
    %v3028 = vpack.c.b16 %v2923, %v2920
    %v3029 = vpack.c.b16 %v2924, %v2921
    %v3030 = vpack.c.b16 %v2925, %v2922
    %v3031 = vpack.c.b16 %v2929, %v2926
    %v3032 = vpack.c.b16 %v2930, %v2927
    %v3033 = vpack.c.b16 %v2931, %v2928
    %v3034 = vpack.c.b16 %v2935, %v2932
    %v3035 = vpack.c.b16 %v2936, %v2933
    %v3036 = vpack.c.b16 %v2937, %v2934
    %v3037 = vpack.c.b16 %v2941, %v2938
    %v3038 = vpack.c.b16 %v2942, %v2939
    %v3039 = vpack.c.b16 %v2943, %v2940
    %v3040 = vpack.c.b16 %v2947, %v2944
    %v3041 = vpack.c.b16 %v2948, %v2945
    %v3042 = vpack.c.b16 %v2949, %v2946
    %v3043 = vpack.c.b16 %v2953, %v2950
    %v3044 = vpack.c.b16 %v2954, %v2951
    %v3045 = vpack.c.b16 %v2955, %v2952
    %v3046 = vpack.c.b16 %v2959, %v2956
    %v3047 = vpack.c.b16 %v2960, %v2957
    %v3048 = vpack.c.b16 %v2961, %v2958
    %v3049 = vpack.c.b16 %v2965, %v2962
    %v3050 = vpack.c.b16 %v2966, %v2963
    %v3051 = vpack.c.b16 %v2967, %v2964
    %v3052 = vpack.c.b16 %v2971, %v2968
    %v3053 = vpack.c.b16 %v2972, %v2969
    %v3054 = vpack.c.b16 %v2973, %v2970
    %v3055 = vpack.c.b16 %v2977, %v2974
    %v3056 = vpack.c.b16 %v2978, %v2975
    %v3057 = vpack.c.b16 %v2979, %v2976
    %v3058 = vpack.c.b16 %v2983, %v2980
    %v3059 = vpack.c.b16 %v2984, %v2981
    %v3060 = vpack.c.b16 %v2985, %v2982
    %v3061 = vpack.c.b16 %v2989, %v2986
    %v3062 = vpack.c.b16 %v2990, %v2987
    %v3063 = vpack.c.b16 %v2991, %v2988
    %3136 = vmatpush.bf16.msra.mxu0 %v3013
    %3137 = vmatpush.bf16.msra.mxu0 %v3010
    %3138 = vmatpush.bf16.msra.mxu0 %v3007
    %3139 = vmatpush.bf16.msra.mxu0 %v3004
    %3140 = vmatpush.bf16.msra.mxu0 %v3001
    %3141 = vmatpush.bf16.msra.mxu0 %v2998
    %3142 = vmatpush.bf16.msra.mxu0 %v2995
    %3143 = vmatpush.bf16.msra.mxu0 %v2992
    %3144 = vmatmul.bf16.gmra.mxu0 %v2645
    %v3145 = vpop.f32.mrf.mxu0
    %v3146 = vadd.f32 %v2746, %v3145
    %v3147 = vpop.f32.mrf.mxu0
    %3148 = vdwg.mxu0
    %3149 = vmatpush.bf16.msra.mxu0 %v3037
    %3150 = vmatpush.bf16.msra.mxu0 %v3034
    %3151 = vmatpush.bf16.msra.mxu0 %v3031
    %3152 = vmatpush.bf16.msra.mxu0 %v3028
    %3153 = vmatpush.bf16.msra.mxu0 %v3025
    %3154 = vmatpush.bf16.msra.mxu0 %v3022
    %3155 = vmatpush.bf16.msra.mxu0 %v3019
    %3156 = vmatpush.bf16.msra.mxu0 %v3016
    %3157 = vmatmul.bf16.gmra.mxu0 %v2646
    %v3158 = vpop.f32.mrf.mxu0
    %v3159 = vadd.f32 %v3146, %v3158
    %v3160 = vpop.f32.mrf.mxu0
    %3161 = vdwg.mxu0
    %3162 = vmatpush.bf16.msra.mxu0 %v3061
    %3163 = vmatpush.bf16.msra.mxu0 %v3058
    %3164 = vmatpush.bf16.msra.mxu0 %v3055
    %3165 = vmatpush.bf16.msra.mxu0 %v3052
    %3166 = vmatpush.bf16.msra.mxu0 %v3049
    %3167 = vmatpush.bf16.msra.mxu0 %v3046
    %3168 = vmatpush.bf16.msra.mxu0 %v3043
    %3169 = vmatpush.bf16.msra.mxu0 %v3040
    %3170 = vmatmul.bf16.gmra.mxu0 %v2647
    %v3171 = vpop.f32.mrf.mxu0
    %v3172 = vadd.f32 %v3159, %v3171
    %v3173 = vpop.f32.mrf.mxu0
    %3174 = vdwg.mxu0
    %3175 = vmatpush.bf16.msra.mxu0 %v3014
    %3176 = vmatpush.bf16.msra.mxu0 %v3011
    %3177 = vmatpush.bf16.msra.mxu0 %v3008
    %3178 = vmatpush.bf16.msra.mxu0 %v3005
    %3179 = vmatpush.bf16.msra.mxu0 %v3002
    %3180 = vmatpush.bf16.msra.mxu0 %v2999
    %3181 = vmatpush.bf16.msra.mxu0 %v2996
    %3182 = vmatpush.bf16.msra.mxu0 %v2993
    %3183 = vmatmul.bf16.gmra.mxu0 %v2645
    %v3184 = vpop.f32.mrf.mxu0
    %v3185 = vadd.f32 %v2747, %v3184
    %v3186 = vpop.f32.mrf.mxu0
    %3187 = vdwg.mxu0
    %3188 = vmatpush.bf16.msra.mxu0 %v3038
    %3189 = vmatpush.bf16.msra.mxu0 %v3035
    %3190 = vmatpush.bf16.msra.mxu0 %v3032
    %3191 = vmatpush.bf16.msra.mxu0 %v3029
    %3192 = vmatpush.bf16.msra.mxu0 %v3026
    %3193 = vmatpush.bf16.msra.mxu0 %v3023
    %3194 = vmatpush.bf16.msra.mxu0 %v3020
    %3195 = vmatpush.bf16.msra.mxu0 %v3017
    %3196 = vmatmul.bf16.gmra.mxu0 %v2646
    %v3197 = vpop.f32.mrf.mxu0
    %v3198 = vadd.f32 %v3185, %v3197
    %v3199 = vpop.f32.mrf.mxu0
    %3200 = vdwg.mxu0
    %3201 = vmatpush.bf16.msra.mxu0 %v3062
    %3202 = vmatpush.bf16.msra.mxu0 %v3059
    %3203 = vmatpush.bf16.msra.mxu0 %v3056
    %3204 = vmatpush.bf16.msra.mxu0 %v3053
    %3205 = vmatpush.bf16.msra.mxu0 %v3050
    %3206 = vmatpush.bf16.msra.mxu0 %v3047
    %3207 = vmatpush.bf16.msra.mxu0 %v3044
    %3208 = vmatpush.bf16.msra.mxu0 %v3041
    %3209 = vmatmul.bf16.gmra.mxu0 %v2647
    %v3210 = vpop.f32.mrf.mxu0
    %v3211 = vadd.f32 %v3198, %v3210
    %v3212 = vpop.f32.mrf.mxu0
    %3213 = vdwg.mxu0
    %3214 = vmatpush.bf16.msra.mxu0 %v3015
    %3215 = vmatpush.bf16.msra.mxu0 %v3012
    %3216 = vmatpush.bf16.msra.mxu0 %v3009
    %3217 = vmatpush.bf16.msra.mxu0 %v3006
    %3218 = vmatpush.bf16.msra.mxu0 %v3003
    %3219 = vmatpush.bf16.msra.mxu0 %v3000
    %3220 = vmatpush.bf16.msra.mxu0 %v2997
    %3221 = vmatpush.bf16.msra.mxu0 %v2994
    %3222 = vmatmul.bf16.gmra.mxu0 %v2645
    %v3223 = vpop.f32.mrf.mxu0
    %v3224 = vadd.f32 %v2748, %v3223
    %v3225 = vpop.f32.mrf.mxu0
    %3226 = vdwg.mxu0
    %3227 = vmatpush.bf16.msra.mxu0 %v3039
    %3228 = vmatpush.bf16.msra.mxu0 %v3036
    %3229 = vmatpush.bf16.msra.mxu0 %v3033
    %3230 = vmatpush.bf16.msra.mxu0 %v3030
    %3231 = vmatpush.bf16.msra.mxu0 %v3027
    %3232 = vmatpush.bf16.msra.mxu0 %v3024
    %3233 = vmatpush.bf16.msra.mxu0 %v3021
    %3234 = vmatpush.bf16.msra.mxu0 %v3018
    %3235 = vmatmul.bf16.gmra.mxu0 %v2646
    %v3236 = vpop.f32.mrf.mxu0
    %v3237 = vadd.f32 %v3224, %v3236
    %v3238 = vpop.f32.mrf.mxu0
    %3239 = vdwg.mxu0
    %3240 = vmatpush.bf16.msra.mxu0 %v3063
    %3241 = vmatpush.bf16.msra.mxu0 %v3060
    %3242 = vmatpush.bf16.msra.mxu0 %v3057
    %3243 = vmatpush.bf16.msra.mxu0 %v3054
    %3244 = vmatpush.bf16.msra.mxu0 %v3051
    %3245 = vmatpush.bf16.msra.mxu0 %v3048
    %3246 = vmatpush.bf16.msra.mxu0 %v3045
    %3247 = vmatpush.bf16.msra.mxu0 %v3042
    %3248 = vmatmul.bf16.gmra.mxu0 %v2647
    %v3249 = vpop.f32.mrf.mxu0
    %v3250 = vadd.f32 %v3237, %v3249
    %v3251 = vpop.f32.mrf.mxu0
    %3252 = vdwg.mxu0
    %v3253 = vmul.f32 %v3172, 0.01
    %v3254 = vmul.f32 %v3211, 0.01
    %v3255 = vmul.f32 %v3250, 0.01
    %v3256 = vmax.f32 %v3172, %v3253
    %v3257 = vmax.f32 %v3211, %v3254
    %v3258 = vmax.f32 %v3250, %v3255
    %v3259 = vpack.c.bf16 %v3256, %v3256
    %v3260 = vpack.c.bf16 %v3257, %v3257
    %v3261 = vpack.c.bf16 %v3258, %v3258
    %v3262 = vld [vmem:[#allocation16] sm:$0xf]
    %v3263 = vld [vmem:[#allocation16 + $0x4] sm:$0xf]
    %v3264 = vld [vmem:[#allocation16 + $0x8] sm:$0xf]
    %v3265 = vld [vmem:[#allocation16 + $0xc] sm:$0xf]
    %v3266 = vld [vmem:[#allocation16 + $0x10] sm:$0xf]
    %v3267 = vld [vmem:[#allocation16 + $0x14] sm:$0xf]
    %v3268 = vld [vmem:[#allocation16 + $0x18] sm:$0xf]
    %v3269 = vld [vmem:[#allocation16 + $0x1c] sm:$0xf]
    %v3270 = vld [vmem:[#allocation16 + $0x20] sm:$0xf]
    %v3271 = vld [vmem:[#allocation16 + $0x24] sm:$0xf]
    %v3272 = vld [vmem:[#allocation16 + $0x28] sm:$0xf]
    %v3273 = vld [vmem:[#allocation16 + $0x2c] sm:$0xf]
    %v3274 = vld [vmem:[#allocation16 + $0x30] sm:$0xf]
    %v3275 = vld [vmem:[#allocation16 + $0x34] sm:$0xf]
    %v3276 = vld [vmem:[#allocation16 + $0x38] sm:$0xf]
    %v3277 = vld [vmem:[#allocation16 + $0x3c] sm:$0xf]
    %v3278 = vld [vmem:[#allocation16 + $0x40] sm:$0xf]
    %v3279 = vld [vmem:[#allocation16 + $0x44] sm:$0xf]
    %v3280 = vld [vmem:[#allocation16 + $0x48] sm:$0xf]
    %v3281 = vld [vmem:[#allocation16 + $0x4c] sm:$0xf]
    %v3282 = vld [vmem:[#allocation16 + $0x50] sm:$0xf]
    %v3283 = vld [vmem:[#allocation16 + $0x54] sm:$0xf]
    %v3284 = vld [vmem:[#allocation16 + $0x58] sm:$0xf]
    %v3285 = vld [vmem:[#allocation16 + $0x5c] sm:$0xf]
    %v3286 = vld [vmem:[#allocation16 + $0x60] sm:$0xf]
    %v3287 = vld [vmem:[#allocation16 + $0x64] sm:$0xf]
    %v3288 = vld [vmem:[#allocation16 + $0x68] sm:$0xf]
    %v3289 = vld [vmem:[#allocation16 + $0x6c] sm:$0xf]
    %v3290 = vld [vmem:[#allocation16 + $0x70] sm:$0xf]
    %v3291 = vld [vmem:[#allocation16 + $0x74] sm:$0xf]
    %v3292 = vld [vmem:[#allocation16 + $0x78] sm:$0xf]
    %v3293 = vld [vmem:[#allocation16 + $0x7c] sm:$0xf]
    %v3294 = vld [vmem:[#allocation16 + $0x80] sm:$0xf]
    %v3295 = vld [vmem:[#allocation16 + $0x84] sm:$0xf]
    %v3296 = vld [vmem:[#allocation16 + $0x88] sm:$0xf]
    %v3297 = vld [vmem:[#allocation16 + $0x8c] sm:$0xf]
    %v3298 = vld [vmem:[#allocation16 + $0x90] sm:$0xf]
    %v3299 = vld [vmem:[#allocation16 + $0x94] sm:$0xf]
    %v3300 = vld [vmem:[#allocation16 + $0x98] sm:$0xf]
    %v3301 = vld [vmem:[#allocation16 + $0x9c] sm:$0xf]
    %v3302 = vld [vmem:[#allocation16 + $0xa0] sm:$0xf]
    %v3303 = vld [vmem:[#allocation16 + $0xa4] sm:$0xf]
    %v3304 = vld [vmem:[#allocation16 + $0xa8] sm:$0xf]
    %v3305 = vld [vmem:[#allocation16 + $0xac] sm:$0xf]
    %v3306 = vld [vmem:[#allocation16 + $0xb0] sm:$0xf]
    %v3307 = vld [vmem:[#allocation16 + $0xb4] sm:$0xf]
    %v3308 = vld [vmem:[#allocation16 + $0xb8] sm:$0xf]
    %v3309 = vld [vmem:[#allocation16 + $0xbc] sm:$0xf]
    %v3310 = vld [vmem:[%s12] sm:$0x1]
    %v3312 = vperm.slane %v3310, 0
    %v3362 = vunpack.c.l.b16 %v3262
    %v3363 = vunpack.c.l.b16 %v3263
    %v3364 = vunpack.c.l.b16 %v3264
    %v3365 = vunpack.c.l.b16 %v3265
    %v3366 = vunpack.c.l.b16 %v3266
    %v3367 = vunpack.c.l.b16 %v3267
    %v3368 = vunpack.c.l.b16 %v3268
    %v3369 = vunpack.c.l.b16 %v3269
    %v3370 = vunpack.c.l.b16 %v3270
    %v3371 = vunpack.c.l.b16 %v3271
    %v3372 = vunpack.c.l.b16 %v3272
    %v3373 = vunpack.c.l.b16 %v3273
    %v3374 = vunpack.c.l.b16 %v3274
    %v3375 = vunpack.c.l.b16 %v3275
    %v3376 = vunpack.c.l.b16 %v3276
    %v3377 = vunpack.c.l.b16 %v3277
    %v3378 = vunpack.c.l.b16 %v3278
    %v3379 = vunpack.c.l.b16 %v3279
    %v3380 = vunpack.c.l.b16 %v3280
    %v3381 = vunpack.c.l.b16 %v3281
    %v3382 = vunpack.c.l.b16 %v3282
    %v3383 = vunpack.c.l.b16 %v3283
    %v3384 = vunpack.c.l.b16 %v3284
    %v3385 = vunpack.c.l.b16 %v3285
    %v3386 = vunpack.c.l.b16 %v3286
    %v3387 = vunpack.c.l.b16 %v3287
    %v3388 = vunpack.c.l.b16 %v3288
    %v3389 = vunpack.c.l.b16 %v3289
    %v3390 = vunpack.c.l.b16 %v3290
    %v3391 = vunpack.c.l.b16 %v3291
    %v3392 = vunpack.c.l.b16 %v3292
    %v3393 = vunpack.c.l.b16 %v3293
    %v3394 = vunpack.c.l.b16 %v3294
    %v3395 = vunpack.c.l.b16 %v3295
    %v3396 = vunpack.c.l.b16 %v3296
    %v3397 = vunpack.c.l.b16 %v3297
    %v3398 = vunpack.c.l.b16 %v3298
    %v3399 = vunpack.c.l.b16 %v3299
    %v3400 = vunpack.c.l.b16 %v3300
    %v3401 = vunpack.c.l.b16 %v3301
    %v3402 = vunpack.c.l.b16 %v3302
    %v3403 = vunpack.c.l.b16 %v3303
    %v3404 = vunpack.c.l.b16 %v3304
    %v3405 = vunpack.c.l.b16 %v3305
    %v3406 = vunpack.c.l.b16 %v3306
    %v3407 = vunpack.c.l.b16 %v3307
    %v3408 = vunpack.c.l.b16 %v3308
    %v3409 = vunpack.c.l.b16 %v3309
    %v3410 = vpack.c.b16 %v3363, %v3362
    %v3411 = vpack.c.b16 %v3365, %v3364
    %v3412 = vpack.c.b16 %v3367, %v3366
    %v3413 = vpack.c.b16 %v3369, %v3368
    %v3414 = vpack.c.b16 %v3371, %v3370
    %v3415 = vpack.c.b16 %v3373, %v3372
    %v3416 = vpack.c.b16 %v3375, %v3374
    %v3417 = vpack.c.b16 %v3377, %v3376
    %v3418 = vpack.c.b16 %v3379, %v3378
    %v3419 = vpack.c.b16 %v3381, %v3380
    %v3420 = vpack.c.b16 %v3383, %v3382
    %v3421 = vpack.c.b16 %v3385, %v3384
    %v3422 = vpack.c.b16 %v3387, %v3386
    %v3423 = vpack.c.b16 %v3389, %v3388
    %v3424 = vpack.c.b16 %v3391, %v3390
    %v3425 = vpack.c.b16 %v3393, %v3392
    %v3426 = vpack.c.b16 %v3395, %v3394
    %v3427 = vpack.c.b16 %v3397, %v3396
    %v3428 = vpack.c.b16 %v3399, %v3398
    %v3429 = vpack.c.b16 %v3401, %v3400
    %v3430 = vpack.c.b16 %v3403, %v3402
    %v3431 = vpack.c.b16 %v3405, %v3404
    %v3432 = vpack.c.b16 %v3407, %v3406
    %v3433 = vpack.c.b16 %v3409, %v3408
    %3458 = vmatpush.bf16.msra.mxu0 %v3417
    %3459 = vmatpush.bf16.msra.mxu0 %v3416
    %3460 = vmatpush.bf16.msra.mxu0 %v3415
    %3461 = vmatpush.bf16.msra.mxu0 %v3414
    %3462 = vmatpush.bf16.msra.mxu0 %v3413
    %3463 = vmatpush.bf16.msra.mxu0 %v3412
    %3464 = vmatpush.bf16.msra.mxu0 %v3411
    %3465 = vmatpush.bf16.msra.mxu0 %v3410
    %3466 = vmatmul.bf16.gmra.mxu0 %v3259
    %v3467 = vpop.f32.mrf.mxu0
    %v3468 = vadd.f32 %v3312, %v3467
    %v3469 = vpop.f32.mrf.mxu0
    %3470 = vdwg.mxu0
    %3471 = vmatpush.bf16.msra.mxu0 %v3425
    %3472 = vmatpush.bf16.msra.mxu0 %v3424
    %3473 = vmatpush.bf16.msra.mxu0 %v3423
    %3474 = vmatpush.bf16.msra.mxu0 %v3422
    %3475 = vmatpush.bf16.msra.mxu0 %v3421
    %3476 = vmatpush.bf16.msra.mxu0 %v3420
    %3477 = vmatpush.bf16.msra.mxu0 %v3419
    %3478 = vmatpush.bf16.msra.mxu0 %v3418
    %3479 = vmatmul.bf16.gmra.mxu0 %v3260
    %v3480 = vpop.f32.mrf.mxu0
    %v3481 = vadd.f32 %v3468, %v3480
    %v3482 = vpop.f32.mrf.mxu0
    %3483 = vdwg.mxu0
    %3484 = vmatpush.bf16.msra.mxu0 %v3433
    %3485 = vmatpush.bf16.msra.mxu0 %v3432
    %3486 = vmatpush.bf16.msra.mxu0 %v3431
    %3487 = vmatpush.bf16.msra.mxu0 %v3430
    %3488 = vmatpush.bf16.msra.mxu0 %v3429
    %3489 = vmatpush.bf16.msra.mxu0 %v3428
    %3490 = vmatpush.bf16.msra.mxu0 %v3427
    %3491 = vmatpush.bf16.msra.mxu0 %v3426
    %3492 = vmatmul.bf16.gmra.mxu0 %v3261
    %v3493 = vpop.f32.mrf.mxu0
    %v3494 = vadd.f32 %v3481, %v3493
    %v3495 = vpop.f32.mrf.mxu0
    %3496 = vdwg.mxu0
    %3497 = vst [vmem:[#allocation17] sm:$0xff] %v3494
    // Predicated region
    $region90: #{tpu_custom_call.1} parent=1 // pred_check
      _
    $region91: #{tpu_custom_call.1} parent=1 // pred_check_branch
      %3499 = sbr.rel (0) target = $region93
    $region92: #{tpu_custom_call.1} parent=1 // pred_region
      %3501 = vsyncadd [#allocation4], 0
      %s3503 = sshll.u32 [#allocation17], 4
      %s3504 = int_to_ptr.vmem [resolvable:$true] %s3503
      %s3505 = sshll.u32 %s13, 4
      %s3506 = int_to_ptr.hbm [resolvable:$true] %s3505
      %3508 = dma.vmem_to_hbm [thread:$0]  %s3504, 128, %s3506, [#allocation4]
    $region93: #{tpu_custom_call.1} parent=1 // pred_fallthru
      _
    // Predicated region
    $region94: #{tpu_custom_call.1} parent=1 // pred_check
      _
    $region95: #{tpu_custom_call.1} parent=1 // pred_check_branch
      %3510 = sbr.rel (0) target = $region97
    $region96: #{tpu_custom_call.1} parent=1 // pred_region
      %3512 = dma.done [#allocation4], 128
    $region97: #{tpu_custom_call.1} parent=1 // pred_fallthru
      _
    %3513 = vsyncpa [#allocation3], 1
    %3514 = vsyncpa [#allocation6], 1
    %3515 = vsyncpa [#allocation9], 1
    %3516 = vsyncpa [#allocation12], 1
    %3517 = vsyncpa [#allocation15], 1
    %3518 = vsyncpa [#allocation4], 1

</llo_original>
